<compile_context>
chip_gen: v6e
topology: v6e:2x2x1
jax: 0.10.0
libtpu: 0.0.40
codegen_flags: <defaults>
</compile_context>

<pallas_src>
import functools

import jax
import jax.numpy as jnp
from jax.experimental import pallas as pl
from jax.experimental.pallas import tpu as pltpu  # noqa: F401  (TPU backend)


def _conv1x1_pad1_add_relu_kernel(wb_ref, x1_ref, x2_ref, o_ref, *, H, W, Wout):
    """Fused pad + 1x1-conv (VPU scaled adds) + bias + residual add + relu.

    wb_ref : (Cin+1, Cout, 1) f32 -- rows 0..Cin-1 = weight cols, row Cin = bias
    x1_ref : (N, Cin, H*W)    f32 -- UNPADDED input, spatial dims flattened
    x2_ref : (N, Cout, P)     f32 -- residual (conv-output shape), P=(H+2)*(W+2)
    o_ref  : (N, Cout, P)     f32
    """
    N, Cin, _ = x1_ref.shape
    Cout = o_ref.shape[1]
    P = o_ref.shape[2]
    row_shape = (N, Cout, W)

    # Parameter broadcasts built exactly once (hoisted out of the row loop).
    b_full = jnp.broadcast_to(wb_ref[Cin], (N, Cout, P))
    b_row = jnp.broadcast_to(wb_ref[Cin], row_shape)
    w_rows = [jnp.broadcast_to(wb_ref[c], row_shape) for c in range(Cin)]

    # Pass 1: relu(x2 + bias) everywhere -- single unmasked-dominant,
    # lane-dense full-block store.  Exactly correct on the zero-padded border.
    o_ref[...] = jnp.maximum(x2_ref[...] + b_full, 0.0)

    # Pass 2: overwrite interior lanes with the conv contribution added.
    # Python loop over H rows is unrolled at trace time; all offsets static.
    for h in range(H):
        src = pl.ds(h * W, W)                # row h of unpadded x1
        dst = pl.ds((h + 1) * Wout + 1, W)   # interior lanes of output row h+1
        x1_row = x1_ref[:, :, src]           # (N, Cin, W)
        acc = x2_ref[:, :, dst] + b_row
        for c in range(Cin):
            acc = acc + w_rows[c] * jnp.broadcast_to(
                x1_row[:, c:c + 1, :], row_shape)
        o_ref[:, :, dst] = jnp.maximum(acc, 0.0)


def pack_conv_params(weight, bias):
    """Pack Conv2d(Cin->Cout, k=1) params once, outside the per-call path.

    weight: (Cout, Cin), bias: (Cout,)  ->  (Cin+1, Cout, 1) f32
    """
    Cout, Cin = weight.shape
    w_t = jnp.transpose(weight).reshape(Cin, Cout, 1)
    b = bias.reshape(1, Cout, 1)
    return jnp.concatenate([w_t, b], axis=0).astype(jnp.float32)


def conv1x1_pad1_add_relu(x1, x2, wb):
    """
    x1 : (N, Cin, H, W)        float32, NCHW (as in PyTorch)
    x2 : (N, Cout, H+2, W+2)   float32, conv-output shape (see NOTE)
    wb : (Cin+1, Cout, 1)      packed weight/bias from pack_conv_params
    returns (N, Cout, H+2, W+2) float32
    """
    N, Cin, H, W = x1.shape
    Cinp1, Cout, _ = wb.shape
    Hout, Wout = H + 2, W + 2
    P = Hout * Wout

    # Layout-preserving (bitcast) reshapes only -- no pad, no transpose.
    x1_flat = x1.reshape(N, Cin, H * W)
    x2_flat = x2.reshape(N, Cout, P)

    kernel = functools.partial(
        _conv1x1_pad1_add_relu_kernel, H=H, W=W, Wout=Wout)

    out_flat = pl.pallas_call(
        kernel,
        out_shape=jax.ShapeDtypeStruct((N, Cout, P), jnp.float32),
        # Tiny problem: single block, no grid, everything resident in VMEM.
        in_specs=[
            pl.BlockSpec((Cinp1, Cout, 1), lambda: (0, 0, 0)),
            pl.BlockSpec((N, Cin, H * W), lambda: (0, 0, 0)),
            pl.BlockSpec((N, Cout, P), lambda: (0, 0, 0)),
        ],
        out_specs=pl.BlockSpec((N, Cout, P), lambda: (0, 0, 0)),
    )(wb, x1_flat, x2_flat)

    return out_flat.reshape(N, Cout, Hout, Wout)


if __name__ == "__main__":
    key = jax.random.PRNGKey(0)
    k1, k2, kw, kb = jax.random.split(key, 4)

    # Small shapes consistent with the module: batch=2, Cin=3, 16x16 spatial.
    N, Cin, H, W = 2, 3, 16, 16
    Cout = 8
    Hout, Wout = H + 2, W + 2

    x1 = jax.random.normal(k1, (N, Cin, H, W), dtype=jnp.float32)
    # x2 uses the conv-output shape (see NOTE at top of file).
    x2 = jax.random.normal(k2, (N, Cout, Hout, Wout), dtype=jnp.float32)

    # Deterministic Conv2d(3, 8, 1) parameters (PyTorch-style uniform init).
    fan_in = Cin * 1 * 1
    bound = 1.0 / (fan_in ** 0.5)
    weight = jax.random.uniform(kw, (Cout, Cin), jnp.float32, -bound, bound)
    bias = jax.random.uniform(kb, (Cout,), jnp.float32, -bound, bound)

    # Parameters packed once, outside the per-call path.
    wb = pack_conv_params(weight, bias)

    fn = jax.jit(conv1x1_pad1_add_relu)
    out = jax.block_until_ready(fn(x1, x2, wb))

    # Pure-JAX reference of the same math.
    x1p = jnp.pad(x1, ((0, 0), (0, 0), (1, 1), (1, 1)))
    ref = jnp.einsum("nchw,oc->nohw", x1p, weight) + bias[None, :, None, None]
    ref = jnp.maximum(ref + x2, 0.0)

    assert out.shape == (N, Cout, Hout, Wout)
    assert jnp.allclose(out, ref, atol=1e-5, rtol=1e-5), float(
        jnp.max(jnp.abs(out - ref)))

    print("KERNEL_OK")
</pallas_src>

<mosaic_0001>
module attributes {stable_mosaic.version = 11 : i64} {
  func.func @_conv1x1_pad1_add_relu_kernel(%arg0: memref<4x8x1xf32, #tpu.memory_space<vmem>>, %arg1: memref<2x3x256xf32, #tpu.memory_space<vmem>>, %arg2: memref<2x8x324xf32, #tpu.memory_space<vmem>>, %arg3: memref<2x8x324xf32, #tpu.memory_space<vmem>>) attributes {dimension_semantics = [], scalar_prefetch = 0 : i64, scratch_operands = 0 : i64, tpu.core_type = #tpu.core_type<tc>} {
    %c3 = arith.constant 3 : index
    %c0 = arith.constant 0 : index
    %c0_0 = arith.constant 0 : index
    %0 = vector.load %arg0[%c3, %c0, %c0_0] : memref<4x8x1xf32, #tpu.memory_space<vmem>>, vector<1x8x1xf32>
    %1 = vector.shape_cast %0 : vector<1x8x1xf32> to vector<8x1xf32>
    %2 = vector.shape_cast %1 : vector<8x1xf32> to vector<1x8x1xf32>
    %3 = vector.broadcast %2 : vector<1x8x1xf32> to vector<2x8x324xf32>
    %c3_1 = arith.constant 3 : index
    %c0_2 = arith.constant 0 : index
    %c0_3 = arith.constant 0 : index
    %4 = vector.load %arg0[%c3_1, %c0_2, %c0_3] : memref<4x8x1xf32, #tpu.memory_space<vmem>>, vector<1x8x1xf32>
    %5 = vector.shape_cast %4 : vector<1x8x1xf32> to vector<8x1xf32>
    %6 = vector.shape_cast %5 : vector<8x1xf32> to vector<1x8x1xf32>
    %7 = vector.broadcast %6 : vector<1x8x1xf32> to vector<2x8x16xf32>
    %c0_4 = arith.constant 0 : index
    %c0_5 = arith.constant 0 : index
    %c0_6 = arith.constant 0 : index
    %8 = vector.load %arg0[%c0_4, %c0_5, %c0_6] : memref<4x8x1xf32, #tpu.memory_space<vmem>>, vector<1x8x1xf32>
    %9 = vector.shape_cast %8 : vector<1x8x1xf32> to vector<8x1xf32>
    %10 = vector.shape_cast %9 : vector<8x1xf32> to vector<1x8x1xf32>
    %11 = vector.broadcast %10 : vector<1x8x1xf32> to vector<2x8x16xf32>
    %c1 = arith.constant 1 : index
    %c0_7 = arith.constant 0 : index
    %c0_8 = arith.constant 0 : index
    %12 = vector.load %arg0[%c1, %c0_7, %c0_8] : memref<4x8x1xf32, #tpu.memory_space<vmem>>, vector<1x8x1xf32>
    %13 = vector.shape_cast %12 : vector<1x8x1xf32> to vector<8x1xf32>
    %14 = vector.shape_cast %13 : vector<8x1xf32> to vector<1x8x1xf32>
    %15 = vector.broadcast %14 : vector<1x8x1xf32> to vector<2x8x16xf32>
    %c2 = arith.constant 2 : index
    %c0_9 = arith.constant 0 : index
    %c0_10 = arith.constant 0 : index
    %16 = vector.load %arg0[%c2, %c0_9, %c0_10] : memref<4x8x1xf32, #tpu.memory_space<vmem>>, vector<1x8x1xf32>
    %17 = vector.shape_cast %16 : vector<1x8x1xf32> to vector<8x1xf32>
    %18 = vector.shape_cast %17 : vector<8x1xf32> to vector<1x8x1xf32>
    %19 = vector.broadcast %18 : vector<1x8x1xf32> to vector<2x8x16xf32>
    %c0_11 = arith.constant 0 : index
    %c0_12 = arith.constant 0 : index
    %c0_13 = arith.constant 0 : index
    %20 = vector.load %arg2[%c0_11, %c0_12, %c0_13] : memref<2x8x324xf32, #tpu.memory_space<vmem>>, vector<2x8x324xf32>
    %21 = arith.addf %20, %3 : vector<2x8x324xf32>
    %cst = arith.constant 0.000000e+00 : f32
    %22 = vector.broadcast %cst : f32 to vector<2x8x324xf32>
    %23 = arith.maximumf %21, %22 : vector<2x8x324xf32>
    %c0_14 = arith.constant 0 : index
    %c0_15 = arith.constant 0 : index
    %c0_16 = arith.constant 0 : index
    %24 = vector.load %arg3[%c0_14, %c0_15, %c0_16] : memref<2x8x324xf32, #tpu.memory_space<vmem>>, vector<2x8x324xf32>
    tpu.vector_store %arg3[%c0_14, %c0_15, %c0_16], %23 {strides = array<i32>} : memref<2x8x324xf32, #tpu.memory_space<vmem>>, vector<2x8x324xf32>,
    %c0_17 = arith.constant 0 : index
    %c0_18 = arith.constant 0 : index
    %c0_19 = arith.constant 0 : index
    %25 = vector.load %arg1[%c0_17, %c0_18, %c0_19] : memref<2x3x256xf32, #tpu.memory_space<vmem>>, vector<2x3x16xf32>
    %c0_20 = arith.constant 0 : index
    %c0_21 = arith.constant 0 : index
    %c19 = arith.constant 19 : index
    %26 = vector.load %arg2[%c0_20, %c0_21, %c19] : memref<2x8x324xf32, #tpu.memory_space<vmem>>, vector<2x8x16xf32>
    %27 = arith.addf %26, %7 : vector<2x8x16xf32>
    %28 = vector.extract_strided_slice %25 {offsets = [0, 0, 0], sizes = [2, 1, 16], strides = [1, 1, 1]} : vector<2x3x16xf32> to vector<2x1x16xf32>
    %29 = vector.shape_cast %28 : vector<2x1x16xf32> to vector<2x1x16xf32>
    %30 = vector.broadcast %29 : vector<2x1x16xf32> to vector<2x8x16xf32>
    %31 = arith.mulf %11, %30 : vector<2x8x16xf32>
    %32 = arith.addf %27, %31 : vector<2x8x16xf32>
    %33 = vector.extract_strided_slice %25 {offsets = [0, 1, 0], sizes = [2, 1, 16], strides = [1, 1, 1]} : vector<2x3x16xf32> to vector<2x1x16xf32>
    %34 = vector.shape_cast %33 : vector<2x1x16xf32> to vector<2x1x16xf32>
    %35 = vector.broadcast %34 : vector<2x1x16xf32> to vector<2x8x16xf32>
    %36 = arith.mulf %15, %35 : vector<2x8x16xf32>
    %37 = arith.addf %32, %36 : vector<2x8x16xf32>
    %38 = vector.extract_strided_slice %25 {offsets = [0, 2, 0], sizes = [2, 1, 16], strides = [1, 1, 1]} : vector<2x3x16xf32> to vector<2x1x16xf32>
    %39 = vector.shape_cast %38 : vector<2x1x16xf32> to vector<2x1x16xf32>
    %40 = vector.broadcast %39 : vector<2x1x16xf32> to vector<2x8x16xf32>
    %41 = arith.mulf %19, %40 : vector<2x8x16xf32>
    %42 = arith.addf %37, %41 : vector<2x8x16xf32>
    %cst_22 = arith.constant 0.000000e+00 : f32
    %43 = vector.broadcast %cst_22 : f32 to vector<2x8x16xf32>
    %44 = arith.maximumf %42, %43 : vector<2x8x16xf32>
    %c0_23 = arith.constant 0 : index
    %c0_24 = arith.constant 0 : index
    %c19_25 = arith.constant 19 : index
    %45 = vector.load %arg3[%c0_23, %c0_24, %c19_25] : memref<2x8x324xf32, #tpu.memory_space<vmem>>, vector<2x8x16xf32>
    tpu.vector_store %arg3[%c0_23, %c0_24, %c19_25], %44 {strides = array<i32>} : memref<2x8x324xf32, #tpu.memory_space<vmem>>, vector<2x8x16xf32>,
    %c0_26 = arith.constant 0 : index
    %c0_27 = arith.constant 0 : index
    %c16 = arith.constant 16 : index
    %46 = vector.load %arg1[%c0_26, %c0_27, %c16] : memref<2x3x256xf32, #tpu.memory_space<vmem>>, vector<2x3x16xf32>
    %c0_28 = arith.constant 0 : index
    %c0_29 = arith.constant 0 : index
    %c37 = arith.constant 37 : index
    %47 = vector.load %arg2[%c0_28, %c0_29, %c37] : memref<2x8x324xf32, #tpu.memory_space<vmem>>, vector<2x8x16xf32>
    %48 = arith.addf %47, %7 : vector<2x8x16xf32>
    %49 = vector.extract_strided_slice %46 {offsets = [0, 0, 0], sizes = [2, 1, 16], strides = [1, 1, 1]} : vector<2x3x16xf32> to vector<2x1x16xf32>
    %50 = vector.shape_cast %49 : vector<2x1x16xf32> to vector<2x1x16xf32>
    %51 = vector.broadcast %50 : vector<2x1x16xf32> to vector<2x8x16xf32>
    %52 = arith.mulf %11, %51 : vector<2x8x16xf32>
    %53 = arith.addf %48, %52 : vector<2x8x16xf32>
    %54 = vector.extract_strided_slice %46 {offsets = [0, 1, 0], sizes = [2, 1, 16], strides = [1, 1, 1]} : vector<2x3x16xf32> to vector<2x1x16xf32>
    %55 = vector.shape_cast %54 : vector<2x1x16xf32> to vector<2x1x16xf32>
    %56 = vector.broadcast %55 : vector<2x1x16xf32> to vector<2x8x16xf32>
    %57 = arith.mulf %15, %56 : vector<2x8x16xf32>
    %58 = arith.addf %53, %57 : vector<2x8x16xf32>
    %59 = vector.extract_strided_slice %46 {offsets = [0, 2, 0], sizes = [2, 1, 16], strides = [1, 1, 1]} : vector<2x3x16xf32> to vector<2x1x16xf32>
    %60 = vector.shape_cast %59 : vector<2x1x16xf32> to vector<2x1x16xf32>
    %61 = vector.broadcast %60 : vector<2x1x16xf32> to vector<2x8x16xf32>
    %62 = arith.mulf %19, %61 : vector<2x8x16xf32>
    %63 = arith.addf %58, %62 : vector<2x8x16xf32>
    %cst_30 = arith.constant 0.000000e+00 : f32
    %64 = vector.broadcast %cst_30 : f32 to vector<2x8x16xf32>
    %65 = arith.maximumf %63, %64 : vector<2x8x16xf32>
    %c0_31 = arith.constant 0 : index
    %c0_32 = arith.constant 0 : index
    %c37_33 = arith.constant 37 : index
    %66 = vector.load %arg3[%c0_31, %c0_32, %c37_33] : memref<2x8x324xf32, #tpu.memory_space<vmem>>, vector<2x8x16xf32>
    tpu.vector_store %arg3[%c0_31, %c0_32, %c37_33], %65 {strides = array<i32>} : memref<2x8x324xf32, #tpu.memory_space<vmem>>, vector<2x8x16xf32>,
    %c0_34 = arith.constant 0 : index
    %c0_35 = arith.constant 0 : index
    %c32 = arith.constant 32 : index
    %67 = vector.load %arg1[%c0_34, %c0_35, %c32] : memref<2x3x256xf32, #tpu.memory_space<vmem>>, vector<2x3x16xf32>
    %c0_36 = arith.constant 0 : index
    %c0_37 = arith.constant 0 : index
    %c55 = arith.constant 55 : index
    %68 = vector.load %arg2[%c0_36, %c0_37, %c55] : memref<2x8x324xf32, #tpu.memory_space<vmem>>, vector<2x8x16xf32>
    %69 = arith.addf %68, %7 : vector<2x8x16xf32>
    %70 = vector.extract_strided_slice %67 {offsets = [0, 0, 0], sizes = [2, 1, 16], strides = [1, 1, 1]} : vector<2x3x16xf32> to vector<2x1x16xf32>
    %71 = vector.shape_cast %70 : vector<2x1x16xf32> to vector<2x1x16xf32>
    %72 = vector.broadcast %71 : vector<2x1x16xf32> to vector<2x8x16xf32>
    %73 = arith.mulf %11, %72 : vector<2x8x16xf32>
    %74 = arith.addf %69, %73 : vector<2x8x16xf32>
    %75 = vector.extract_strided_slice %67 {offsets = [0, 1, 0], sizes = [2, 1, 16], strides = [1, 1, 1]} : vector<2x3x16xf32> to vector<2x1x16xf32>
    %76 = vector.shape_cast %75 : vector<2x1x16xf32> to vector<2x1x16xf32>
    %77 = vector.broadcast %76 : vector<2x1x16xf32> to vector<2x8x16xf32>
    %78 = arith.mulf %15, %77 : vector<2x8x16xf32>
    %79 = arith.addf %74, %78 : vector<2x8x16xf32>
    %80 = vector.extract_strided_slice %67 {offsets = [0, 2, 0], sizes = [2, 1, 16], strides = [1, 1, 1]} : vector<2x3x16xf32> to vector<2x1x16xf32>
    %81 = vector.shape_cast %80 : vector<2x1x16xf32> to vector<2x1x16xf32>
    %82 = vector.broadcast %81 : vector<2x1x16xf32> to vector<2x8x16xf32>
    %83 = arith.mulf %19, %82 : vector<2x8x16xf32>
    %84 = arith.addf %79, %83 : vector<2x8x16xf32>
    %cst_38 = arith.constant 0.000000e+00 : f32
    %85 = vector.broadcast %cst_38 : f32 to vector<2x8x16xf32>
    %86 = arith.maximumf %84, %85 : vector<2x8x16xf32>
    %c0_39 = arith.constant 0 : index
    %c0_40 = arith.constant 0 : index
    %c55_41 = arith.constant 55 : index
    %87 = vector.load %arg3[%c0_39, %c0_40, %c55_41] : memref<2x8x324xf32, #tpu.memory_space<vmem>>, vector<2x8x16xf32>
    tpu.vector_store %arg3[%c0_39, %c0_40, %c55_41], %86 {strides = array<i32>} : memref<2x8x324xf32, #tpu.memory_space<vmem>>, vector<2x8x16xf32>,
    %c0_42 = arith.constant 0 : index
    %c0_43 = arith.constant 0 : index
    %c48 = arith.constant 48 : index
    %88 = vector.load %arg1[%c0_42, %c0_43, %c48] : memref<2x3x256xf32, #tpu.memory_space<vmem>>, vector<2x3x16xf32>
    %c0_44 = arith.constant 0 : index
    %c0_45 = arith.constant 0 : index
    %c73 = arith.constant 73 : index
    %89 = vector.load %arg2[%c0_44, %c0_45, %c73] : memref<2x8x324xf32, #tpu.memory_space<vmem>>, vector<2x8x16xf32>
    %90 = arith.addf %89, %7 : vector<2x8x16xf32>
    %91 = vector.extract_strided_slice %88 {offsets = [0, 0, 0], sizes = [2, 1, 16], strides = [1, 1, 1]} : vector<2x3x16xf32> to vector<2x1x16xf32>
    %92 = vector.shape_cast %91 : vector<2x1x16xf32> to vector<2x1x16xf32>
    %93 = vector.broadcast %92 : vector<2x1x16xf32> to vector<2x8x16xf32>
    %94 = arith.mulf %11, %93 : vector<2x8x16xf32>
    %95 = arith.addf %90, %94 : vector<2x8x16xf32>
    %96 = vector.extract_strided_slice %88 {offsets = [0, 1, 0], sizes = [2, 1, 16], strides = [1, 1, 1]} : vector<2x3x16xf32> to vector<2x1x16xf32>
    %97 = vector.shape_cast %96 : vector<2x1x16xf32> to vector<2x1x16xf32>
    %98 = vector.broadcast %97 : vector<2x1x16xf32> to vector<2x8x16xf32>
    %99 = arith.mulf %15, %98 : vector<2x8x16xf32>
    %100 = arith.addf %95, %99 : vector<2x8x16xf32>
    %101 = vector.extract_strided_slice %88 {offsets = [0, 2, 0], sizes = [2, 1, 16], strides = [1, 1, 1]} : vector<2x3x16xf32> to vector<2x1x16xf32>
    %102 = vector.shape_cast %101 : vector<2x1x16xf32> to vector<2x1x16xf32>
    %103 = vector.broadcast %102 : vector<2x1x16xf32> to vector<2x8x16xf32>
    %104 = arith.mulf %19, %103 : vector<2x8x16xf32>
    %105 = arith.addf %100, %104 : vector<2x8x16xf32>
    %cst_46 = arith.constant 0.000000e+00 : f32
    %106 = vector.broadcast %cst_46 : f32 to vector<2x8x16xf32>
    %107 = arith.maximumf %105, %106 : vector<2x8x16xf32>
    %c0_47 = arith.constant 0 : index
    %c0_48 = arith.constant 0 : index
    %c73_49 = arith.constant 73 : index
    %108 = vector.load %arg3[%c0_47, %c0_48, %c73_49] : memref<2x8x324xf32, #tpu.memory_space<vmem>>, vector<2x8x16xf32>
    tpu.vector_store %arg3[%c0_47, %c0_48, %c73_49], %107 {strides = array<i32>} : memref<2x8x324xf32, #tpu.memory_space<vmem>>, vector<2x8x16xf32>,
    %c0_50 = arith.constant 0 : index
    %c0_51 = arith.constant 0 : index
    %c64 = arith.constant 64 : index
    %109 = vector.load %arg1[%c0_50, %c0_51, %c64] : memref<2x3x256xf32, #tpu.memory_space<vmem>>, vector<2x3x16xf32>
    %c0_52 = arith.constant 0 : index
    %c0_53 = arith.constant 0 : index
    %c91 = arith.constant 91 : index
    %110 = vector.load %arg2[%c0_52, %c0_53, %c91] : memref<2x8x324xf32, #tpu.memory_space<vmem>>, vector<2x8x16xf32>
    %111 = arith.addf %110, %7 : vector<2x8x16xf32>
    %112 = vector.extract_strided_slice %109 {offsets = [0, 0, 0], sizes = [2, 1, 16], strides = [1, 1, 1]} : vector<2x3x16xf32> to vector<2x1x16xf32>
    %113 = vector.shape_cast %112 : vector<2x1x16xf32> to vector<2x1x16xf32>
    %114 = vector.broadcast %113 : vector<2x1x16xf32> to vector<2x8x16xf32>
    %115 = arith.mulf %11, %114 : vector<2x8x16xf32>
    %116 = arith.addf %111, %115 : vector<2x8x16xf32>
    %117 = vector.extract_strided_slice %109 {offsets = [0, 1, 0], sizes = [2, 1, 16], strides = [1, 1, 1]} : vector<2x3x16xf32> to vector<2x1x16xf32>
    %118 = vector.shape_cast %117 : vector<2x1x16xf32> to vector<2x1x16xf32>
    %119 = vector.broadcast %118 : vector<2x1x16xf32> to vector<2x8x16xf32>
    %120 = arith.mulf %15, %119 : vector<2x8x16xf32>
    %121 = arith.addf %116, %120 : vector<2x8x16xf32>
    %122 = vector.extract_strided_slice %109 {offsets = [0, 2, 0], sizes = [2, 1, 16], strides = [1, 1, 1]} : vector<2x3x16xf32> to vector<2x1x16xf32>
    %123 = vector.shape_cast %122 : vector<2x1x16xf32> to vector<2x1x16xf32>
    %124 = vector.broadcast %123 : vector<2x1x16xf32> to vector<2x8x16xf32>
    %125 = arith.mulf %19, %124 : vector<2x8x16xf32>
    %126 = arith.addf %121, %125 : vector<2x8x16xf32>
    %cst_54 = arith.constant 0.000000e+00 : f32
    %127 = vector.broadcast %cst_54 : f32 to vector<2x8x16xf32>
    %128 = arith.maximumf %126, %127 : vector<2x8x16xf32>
    %c0_55 = arith.constant 0 : index
    %c0_56 = arith.constant 0 : index
    %c91_57 = arith.constant 91 : index
    %129 = vector.load %arg3[%c0_55, %c0_56, %c91_57] : memref<2x8x324xf32, #tpu.memory_space<vmem>>, vector<2x8x16xf32>
    tpu.vector_store %arg3[%c0_55, %c0_56, %c91_57], %128 {strides = array<i32>} : memref<2x8x324xf32, #tpu.memory_space<vmem>>, vector<2x8x16xf32>,
    %c0_58 = arith.constant 0 : index
    %c0_59 = arith.constant 0 : index
    %c80 = arith.constant 80 : index
    %130 = vector.load %arg1[%c0_58, %c0_59, %c80] : memref<2x3x256xf32, #tpu.memory_space<vmem>>, vector<2x3x16xf32>
    %c0_60 = arith.constant 0 : index
    %c0_61 = arith.constant 0 : index
    %c109 = arith.constant 109 : index
    %131 = vector.load %arg2[%c0_60, %c0_61, %c109] : memref<2x8x324xf32, #tpu.memory_space<vmem>>, vector<2x8x16xf32>
    %132 = arith.addf %131, %7 : vector<2x8x16xf32>
    %133 = vector.extract_strided_slice %130 {offsets = [0, 0, 0], sizes = [2, 1, 16], strides = [1, 1, 1]} : vector<2x3x16xf32> to vector<2x1x16xf32>
    %134 = vector.shape_cast %133 : vector<2x1x16xf32> to vector<2x1x16xf32>
    %135 = vector.broadcast %134 : vector<2x1x16xf32> to vector<2x8x16xf32>
    %136 = arith.mulf %11, %135 : vector<2x8x16xf32>
    %137 = arith.addf %132, %136 : vector<2x8x16xf32>
    %138 = vector.extract_strided_slice %130 {offsets = [0, 1, 0], sizes = [2, 1, 16], strides = [1, 1, 1]} : vector<2x3x16xf32> to vector<2x1x16xf32>
    %139 = vector.shape_cast %138 : vector<2x1x16xf32> to vector<2x1x16xf32>
    %140 = vector.broadcast %139 : vector<2x1x16xf32> to vector<2x8x16xf32>
    %141 = arith.mulf %15, %140 : vector<2x8x16xf32>
    %142 = arith.addf %137, %141 : vector<2x8x16xf32>
    %143 = vector.extract_strided_slice %130 {offsets = [0, 2, 0], sizes = [2, 1, 16], strides = [1, 1, 1]} : vector<2x3x16xf32> to vector<2x1x16xf32>
    %144 = vector.shape_cast %143 : vector<2x1x16xf32> to vector<2x1x16xf32>
    %145 = vector.broadcast %144 : vector<2x1x16xf32> to vector<2x8x16xf32>
    %146 = arith.mulf %19, %145 : vector<2x8x16xf32>
    %147 = arith.addf %142, %146 : vector<2x8x16xf32>
    %cst_62 = arith.constant 0.000000e+00 : f32
    %148 = vector.broadcast %cst_62 : f32 to vector<2x8x16xf32>
    %149 = arith.maximumf %147, %148 : vector<2x8x16xf32>
    %c0_63 = arith.constant 0 : index
    %c0_64 = arith.constant 0 : index
    %c109_65 = arith.constant 109 : index
    %150 = vector.load %arg3[%c0_63, %c0_64, %c109_65] : memref<2x8x324xf32, #tpu.memory_space<vmem>>, vector<2x8x16xf32>
    tpu.vector_store %arg3[%c0_63, %c0_64, %c109_65], %149 {strides = array<i32>} : memref<2x8x324xf32, #tpu.memory_space<vmem>>, vector<2x8x16xf32>,
    %c0_66 = arith.constant 0 : index
    %c0_67 = arith.constant 0 : index
    %c96 = arith.constant 96 : index
    %151 = vector.load %arg1[%c0_66, %c0_67, %c96] : memref<2x3x256xf32, #tpu.memory_space<vmem>>, vector<2x3x16xf32>
    %c0_68 = arith.constant 0 : index
    %c0_69 = arith.constant 0 : index
    %c127 = arith.constant 127 : index
    %152 = vector.load %arg2[%c0_68, %c0_69, %c127] : memref<2x8x324xf32, #tpu.memory_space<vmem>>, vector<2x8x16xf32>
    %153 = arith.addf %152, %7 : vector<2x8x16xf32>
    %154 = vector.extract_strided_slice %151 {offsets = [0, 0, 0], sizes = [2, 1, 16], strides = [1, 1, 1]} : vector<2x3x16xf32> to vector<2x1x16xf32>
    %155 = vector.shape_cast %154 : vector<2x1x16xf32> to vector<2x1x16xf32>
    %156 = vector.broadcast %155 : vector<2x1x16xf32> to vector<2x8x16xf32>
    %157 = arith.mulf %11, %156 : vector<2x8x16xf32>
    %158 = arith.addf %153, %157 : vector<2x8x16xf32>
    %159 = vector.extract_strided_slice %151 {offsets = [0, 1, 0], sizes = [2, 1, 16], strides = [1, 1, 1]} : vector<2x3x16xf32> to vector<2x1x16xf32>
    %160 = vector.shape_cast %159 : vector<2x1x16xf32> to vector<2x1x16xf32>
    %161 = vector.broadcast %160 : vector<2x1x16xf32> to vector<2x8x16xf32>
    %162 = arith.mulf %15, %161 : vector<2x8x16xf32>
    %163 = arith.addf %158, %162 : vector<2x8x16xf32>
    %164 = vector.extract_strided_slice %151 {offsets = [0, 2, 0], sizes = [2, 1, 16], strides = [1, 1, 1]} : vector<2x3x16xf32> to vector<2x1x16xf32>
    %165 = vector.shape_cast %164 : vector<2x1x16xf32> to vector<2x1x16xf32>
    %166 = vector.broadcast %165 : vector<2x1x16xf32> to vector<2x8x16xf32>
    %167 = arith.mulf %19, %166 : vector<2x8x16xf32>
    %168 = arith.addf %163, %167 : vector<2x8x16xf32>
    %cst_70 = arith.constant 0.000000e+00 : f32
    %169 = vector.broadcast %cst_70 : f32 to vector<2x8x16xf32>
    %170 = arith.maximumf %168, %169 : vector<2x8x16xf32>
    %c0_71 = arith.constant 0 : index
    %c0_72 = arith.constant 0 : index
    %c127_73 = arith.constant 127 : index
    %171 = vector.load %arg3[%c0_71, %c0_72, %c127_73] : memref<2x8x324xf32, #tpu.memory_space<vmem>>, vector<2x8x16xf32>
    tpu.vector_store %arg3[%c0_71, %c0_72, %c127_73], %170 {strides = array<i32>} : memref<2x8x324xf32, #tpu.memory_space<vmem>>, vector<2x8x16xf32>,
    %c0_74 = arith.constant 0 : index
    %c0_75 = arith.constant 0 : index
    %c112 = arith.constant 112 : index
    %172 = vector.load %arg1[%c0_74, %c0_75, %c112] : memref<2x3x256xf32, #tpu.memory_space<vmem>>, vector<2x3x16xf32>
    %c0_76 = arith.constant 0 : index
    %c0_77 = arith.constant 0 : index
    %c145 = arith.constant 145 : index
    %173 = vector.load %arg2[%c0_76, %c0_77, %c145] : memref<2x8x324xf32, #tpu.memory_space<vmem>>, vector<2x8x16xf32>
    %174 = arith.addf %173, %7 : vector<2x8x16xf32>
    %175 = vector.extract_strided_slice %172 {offsets = [0, 0, 0], sizes = [2, 1, 16], strides = [1, 1, 1]} : vector<2x3x16xf32> to vector<2x1x16xf32>
    %176 = vector.shape_cast %175 : vector<2x1x16xf32> to vector<2x1x16xf32>
    %177 = vector.broadcast %176 : vector<2x1x16xf32> to vector<2x8x16xf32>
    %178 = arith.mulf %11, %177 : vector<2x8x16xf32>
    %179 = arith.addf %174, %178 : vector<2x8x16xf32>
    %180 = vector.extract_strided_slice %172 {offsets = [0, 1, 0], sizes = [2, 1, 16], strides = [1, 1, 1]} : vector<2x3x16xf32> to vector<2x1x16xf32>
    %181 = vector.shape_cast %180 : vector<2x1x16xf32> to vector<2x1x16xf32>
    %182 = vector.broadcast %181 : vector<2x1x16xf32> to vector<2x8x16xf32>
    %183 = arith.mulf %15, %182 : vector<2x8x16xf32>
    %184 = arith.addf %179, %183 : vector<2x8x16xf32>
    %185 = vector.extract_strided_slice %172 {offsets = [0, 2, 0], sizes = [2, 1, 16], strides = [1, 1, 1]} : vector<2x3x16xf32> to vector<2x1x16xf32>
    %186 = vector.shape_cast %185 : vector<2x1x16xf32> to vector<2x1x16xf32>
    %187 = vector.broadcast %186 : vector<2x1x16xf32> to vector<2x8x16xf32>
    %188 = arith.mulf %19, %187 : vector<2x8x16xf32>
    %189 = arith.addf %184, %188 : vector<2x8x16xf32>
    %cst_78 = arith.constant 0.000000e+00 : f32
    %190 = vector.broadcast %cst_78 : f32 to vector<2x8x16xf32>
    %191 = arith.maximumf %189, %190 : vector<2x8x16xf32>
    %c0_79 = arith.constant 0 : index
    %c0_80 = arith.constant 0 : index
    %c145_81 = arith.constant 145 : index
    %192 = vector.load %arg3[%c0_79, %c0_80, %c145_81] : memref<2x8x324xf32, #tpu.memory_space<vmem>>, vector<2x8x16xf32>
    tpu.vector_store %arg3[%c0_79, %c0_80, %c145_81], %191 {strides = array<i32>} : memref<2x8x324xf32, #tpu.memory_space<vmem>>, vector<2x8x16xf32>,
    %c0_82 = arith.constant 0 : index
    %c0_83 = arith.constant 0 : index
    %c128 = arith.constant 128 : index
    %193 = vector.load %arg1[%c0_82, %c0_83, %c128] : memref<2x3x256xf32, #tpu.memory_space<vmem>>, vector<2x3x16xf32>
    %c0_84 = arith.constant 0 : index
    %c0_85 = arith.constant 0 : index
    %c163 = arith.constant 163 : index
    %194 = vector.load %arg2[%c0_84, %c0_85, %c163] : memref<2x8x324xf32, #tpu.memory_space<vmem>>, vector<2x8x16xf32>
    %195 = arith.addf %194, %7 : vector<2x8x16xf32>
    %196 = vector.extract_strided_slice %193 {offsets = [0, 0, 0], sizes = [2, 1, 16], strides = [1, 1, 1]} : vector<2x3x16xf32> to vector<2x1x16xf32>
    %197 = vector.shape_cast %196 : vector<2x1x16xf32> to vector<2x1x16xf32>
    %198 = vector.broadcast %197 : vector<2x1x16xf32> to vector<2x8x16xf32>
    %199 = arith.mulf %11, %198 : vector<2x8x16xf32>
    %200 = arith.addf %195, %199 : vector<2x8x16xf32>
    %201 = vector.extract_strided_slice %193 {offsets = [0, 1, 0], sizes = [2, 1, 16], strides = [1, 1, 1]} : vector<2x3x16xf32> to vector<2x1x16xf32>
    %202 = vector.shape_cast %201 : vector<2x1x16xf32> to vector<2x1x16xf32>
    %203 = vector.broadcast %202 : vector<2x1x16xf32> to vector<2x8x16xf32>
    %204 = arith.mulf %15, %203 : vector<2x8x16xf32>
    %205 = arith.addf %200, %204 : vector<2x8x16xf32>
    %206 = vector.extract_strided_slice %193 {offsets = [0, 2, 0], sizes = [2, 1, 16], strides = [1, 1, 1]} : vector<2x3x16xf32> to vector<2x1x16xf32>
    %207 = vector.shape_cast %206 : vector<2x1x16xf32> to vector<2x1x16xf32>
    %208 = vector.broadcast %207 : vector<2x1x16xf32> to vector<2x8x16xf32>
    %209 = arith.mulf %19, %208 : vector<2x8x16xf32>
    %210 = arith.addf %205, %209 : vector<2x8x16xf32>
    %cst_86 = arith.constant 0.000000e+00 : f32
    %211 = vector.broadcast %cst_86 : f32 to vector<2x8x16xf32>
    %212 = arith.maximumf %210, %211 : vector<2x8x16xf32>
    %c0_87 = arith.constant 0 : index
    %c0_88 = arith.constant 0 : index
    %c163_89 = arith.constant 163 : index
    %213 = vector.load %arg3[%c0_87, %c0_88, %c163_89] : memref<2x8x324xf32, #tpu.memory_space<vmem>>, vector<2x8x16xf32>
    tpu.vector_store %arg3[%c0_87, %c0_88, %c163_89], %212 {strides = array<i32>} : memref<2x8x324xf32, #tpu.memory_space<vmem>>, vector<2x8x16xf32>,
    %c0_90 = arith.constant 0 : index
    %c0_91 = arith.constant 0 : index
    %c144 = arith.constant 144 : index
    %214 = vector.load %arg1[%c0_90, %c0_91, %c144] : memref<2x3x256xf32, #tpu.memory_space<vmem>>, vector<2x3x16xf32>
    %c0_92 = arith.constant 0 : index
    %c0_93 = arith.constant 0 : index
    %c181 = arith.constant 181 : index
    %215 = vector.load %arg2[%c0_92, %c0_93, %c181] : memref<2x8x324xf32, #tpu.memory_space<vmem>>, vector<2x8x16xf32>
    %216 = arith.addf %215, %7 : vector<2x8x16xf32>
    %217 = vector.extract_strided_slice %214 {offsets = [0, 0, 0], sizes = [2, 1, 16], strides = [1, 1, 1]} : vector<2x3x16xf32> to vector<2x1x16xf32>
    %218 = vector.shape_cast %217 : vector<2x1x16xf32> to vector<2x1x16xf32>
    %219 = vector.broadcast %218 : vector<2x1x16xf32> to vector<2x8x16xf32>
    %220 = arith.mulf %11, %219 : vector<2x8x16xf32>
    %221 = arith.addf %216, %220 : vector<2x8x16xf32>
    %222 = vector.extract_strided_slice %214 {offsets = [0, 1, 0], sizes = [2, 1, 16], strides = [1, 1, 1]} : vector<2x3x16xf32> to vector<2x1x16xf32>
    %223 = vector.shape_cast %222 : vector<2x1x16xf32> to vector<2x1x16xf32>
    %224 = vector.broadcast %223 : vector<2x1x16xf32> to vector<2x8x16xf32>
    %225 = arith.mulf %15, %224 : vector<2x8x16xf32>
    %226 = arith.addf %221, %225 : vector<2x8x16xf32>
    %227 = vector.extract_strided_slice %214 {offsets = [0, 2, 0], sizes = [2, 1, 16], strides = [1, 1, 1]} : vector<2x3x16xf32> to vector<2x1x16xf32>
    %228 = vector.shape_cast %227 : vector<2x1x16xf32> to vector<2x1x16xf32>
    %229 = vector.broadcast %228 : vector<2x1x16xf32> to vector<2x8x16xf32>
    %230 = arith.mulf %19, %229 : vector<2x8x16xf32>
    %231 = arith.addf %226, %230 : vector<2x8x16xf32>
    %cst_94 = arith.constant 0.000000e+00 : f32
    %232 = vector.broadcast %cst_94 : f32 to vector<2x8x16xf32>
    %233 = arith.maximumf %231, %232 : vector<2x8x16xf32>
    %c0_95 = arith.constant 0 : index
    %c0_96 = arith.constant 0 : index
    %c181_97 = arith.constant 181 : index
    %234 = vector.load %arg3[%c0_95, %c0_96, %c181_97] : memref<2x8x324xf32, #tpu.memory_space<vmem>>, vector<2x8x16xf32>
    tpu.vector_store %arg3[%c0_95, %c0_96, %c181_97], %233 {strides = array<i32>} : memref<2x8x324xf32, #tpu.memory_space<vmem>>, vector<2x8x16xf32>,
    %c0_98 = arith.constant 0 : index
    %c0_99 = arith.constant 0 : index
    %c160 = arith.constant 160 : index
    %235 = vector.load %arg1[%c0_98, %c0_99, %c160] : memref<2x3x256xf32, #tpu.memory_space<vmem>>, vector<2x3x16xf32>
    %c0_100 = arith.constant 0 : index
    %c0_101 = arith.constant 0 : index
    %c199 = arith.constant 199 : index
    %236 = vector.load %arg2[%c0_100, %c0_101, %c199] : memref<2x8x324xf32, #tpu.memory_space<vmem>>, vector<2x8x16xf32>
    %237 = arith.addf %236, %7 : vector<2x8x16xf32>
    %238 = vector.extract_strided_slice %235 {offsets = [0, 0, 0], sizes = [2, 1, 16], strides = [1, 1, 1]} : vector<2x3x16xf32> to vector<2x1x16xf32>
    %239 = vector.shape_cast %238 : vector<2x1x16xf32> to vector<2x1x16xf32>
    %240 = vector.broadcast %239 : vector<2x1x16xf32> to vector<2x8x16xf32>
    %241 = arith.mulf %11, %240 : vector<2x8x16xf32>
    %242 = arith.addf %237, %241 : vector<2x8x16xf32>
    %243 = vector.extract_strided_slice %235 {offsets = [0, 1, 0], sizes = [2, 1, 16], strides = [1, 1, 1]} : vector<2x3x16xf32> to vector<2x1x16xf32>
    %244 = vector.shape_cast %243 : vector<2x1x16xf32> to vector<2x1x16xf32>
    %245 = vector.broadcast %244 : vector<2x1x16xf32> to vector<2x8x16xf32>
    %246 = arith.mulf %15, %245 : vector<2x8x16xf32>
    %247 = arith.addf %242, %246 : vector<2x8x16xf32>
    %248 = vector.extract_strided_slice %235 {offsets = [0, 2, 0], sizes = [2, 1, 16], strides = [1, 1, 1]} : vector<2x3x16xf32> to vector<2x1x16xf32>
    %249 = vector.shape_cast %248 : vector<2x1x16xf32> to vector<2x1x16xf32>
    %250 = vector.broadcast %249 : vector<2x1x16xf32> to vector<2x8x16xf32>
    %251 = arith.mulf %19, %250 : vector<2x8x16xf32>
    %252 = arith.addf %247, %251 : vector<2x8x16xf32>
    %cst_102 = arith.constant 0.000000e+00 : f32
    %253 = vector.broadcast %cst_102 : f32 to vector<2x8x16xf32>
    %254 = arith.maximumf %252, %253 : vector<2x8x16xf32>
    %c0_103 = arith.constant 0 : index
    %c0_104 = arith.constant 0 : index
    %c199_105 = arith.constant 199 : index
    %255 = vector.load %arg3[%c0_103, %c0_104, %c199_105] : memref<2x8x324xf32, #tpu.memory_space<vmem>>, vector<2x8x16xf32>
    tpu.vector_store %arg3[%c0_103, %c0_104, %c199_105], %254 {strides = array<i32>} : memref<2x8x324xf32, #tpu.memory_space<vmem>>, vector<2x8x16xf32>,
    %c0_106 = arith.constant 0 : index
    %c0_107 = arith.constant 0 : index
    %c176 = arith.constant 176 : index
    %256 = vector.load %arg1[%c0_106, %c0_107, %c176] : memref<2x3x256xf32, #tpu.memory_space<vmem>>, vector<2x3x16xf32>
    %c0_108 = arith.constant 0 : index
    %c0_109 = arith.constant 0 : index
    %c217 = arith.constant 217 : index
    %257 = vector.load %arg2[%c0_108, %c0_109, %c217] : memref<2x8x324xf32, #tpu.memory_space<vmem>>, vector<2x8x16xf32>
    %258 = arith.addf %257, %7 : vector<2x8x16xf32>
    %259 = vector.extract_strided_slice %256 {offsets = [0, 0, 0], sizes = [2, 1, 16], strides = [1, 1, 1]} : vector<2x3x16xf32> to vector<2x1x16xf32>
    %260 = vector.shape_cast %259 : vector<2x1x16xf32> to vector<2x1x16xf32>
    %261 = vector.broadcast %260 : vector<2x1x16xf32> to vector<2x8x16xf32>
    %262 = arith.mulf %11, %261 : vector<2x8x16xf32>
    %263 = arith.addf %258, %262 : vector<2x8x16xf32>
    %264 = vector.extract_strided_slice %256 {offsets = [0, 1, 0], sizes = [2, 1, 16], strides = [1, 1, 1]} : vector<2x3x16xf32> to vector<2x1x16xf32>
    %265 = vector.shape_cast %264 : vector<2x1x16xf32> to vector<2x1x16xf32>
    %266 = vector.broadcast %265 : vector<2x1x16xf32> to vector<2x8x16xf32>
    %267 = arith.mulf %15, %266 : vector<2x8x16xf32>
    %268 = arith.addf %263, %267 : vector<2x8x16xf32>
    %269 = vector.extract_strided_slice %256 {offsets = [0, 2, 0], sizes = [2, 1, 16], strides = [1, 1, 1]} : vector<2x3x16xf32> to vector<2x1x16xf32>
    %270 = vector.shape_cast %269 : vector<2x1x16xf32> to vector<2x1x16xf32>
    %271 = vector.broadcast %270 : vector<2x1x16xf32> to vector<2x8x16xf32>
    %272 = arith.mulf %19, %271 : vector<2x8x16xf32>
    %273 = arith.addf %268, %272 : vector<2x8x16xf32>
    %cst_110 = arith.constant 0.000000e+00 : f32
    %274 = vector.broadcast %cst_110 : f32 to vector<2x8x16xf32>
    %275 = arith.maximumf %273, %274 : vector<2x8x16xf32>
    %c0_111 = arith.constant 0 : index
    %c0_112 = arith.constant 0 : index
    %c217_113 = arith.constant 217 : index
    %276 = vector.load %arg3[%c0_111, %c0_112, %c217_113] : memref<2x8x324xf32, #tpu.memory_space<vmem>>, vector<2x8x16xf32>
    tpu.vector_store %arg3[%c0_111, %c0_112, %c217_113], %275 {strides = array<i32>} : memref<2x8x324xf32, #tpu.memory_space<vmem>>, vector<2x8x16xf32>,
    %c0_114 = arith.constant 0 : index
    %c0_115 = arith.constant 0 : index
    %c192 = arith.constant 192 : index
    %277 = vector.load %arg1[%c0_114, %c0_115, %c192] : memref<2x3x256xf32, #tpu.memory_space<vmem>>, vector<2x3x16xf32>
    %c0_116 = arith.constant 0 : index
    %c0_117 = arith.constant 0 : index
    %c235 = arith.constant 235 : index
    %278 = vector.load %arg2[%c0_116, %c0_117, %c235] : memref<2x8x324xf32, #tpu.memory_space<vmem>>, vector<2x8x16xf32>
    %279 = arith.addf %278, %7 : vector<2x8x16xf32>
    %280 = vector.extract_strided_slice %277 {offsets = [0, 0, 0], sizes = [2, 1, 16], strides = [1, 1, 1]} : vector<2x3x16xf32> to vector<2x1x16xf32>
    %281 = vector.shape_cast %280 : vector<2x1x16xf32> to vector<2x1x16xf32>
    %282 = vector.broadcast %281 : vector<2x1x16xf32> to vector<2x8x16xf32>
    %283 = arith.mulf %11, %282 : vector<2x8x16xf32>
    %284 = arith.addf %279, %283 : vector<2x8x16xf32>
    %285 = vector.extract_strided_slice %277 {offsets = [0, 1, 0], sizes = [2, 1, 16], strides = [1, 1, 1]} : vector<2x3x16xf32> to vector<2x1x16xf32>
    %286 = vector.shape_cast %285 : vector<2x1x16xf32> to vector<2x1x16xf32>
    %287 = vector.broadcast %286 : vector<2x1x16xf32> to vector<2x8x16xf32>
    %288 = arith.mulf %15, %287 : vector<2x8x16xf32>
    %289 = arith.addf %284, %288 : vector<2x8x16xf32>
    %290 = vector.extract_strided_slice %277 {offsets = [0, 2, 0], sizes = [2, 1, 16], strides = [1, 1, 1]} : vector<2x3x16xf32> to vector<2x1x16xf32>
    %291 = vector.shape_cast %290 : vector<2x1x16xf32> to vector<2x1x16xf32>
    %292 = vector.broadcast %291 : vector<2x1x16xf32> to vector<2x8x16xf32>
    %293 = arith.mulf %19, %292 : vector<2x8x16xf32>
    %294 = arith.addf %289, %293 : vector<2x8x16xf32>
    %cst_118 = arith.constant 0.000000e+00 : f32
    %295 = vector.broadcast %cst_118 : f32 to vector<2x8x16xf32>
    %296 = arith.maximumf %294, %295 : vector<2x8x16xf32>
    %c0_119 = arith.constant 0 : index
    %c0_120 = arith.constant 0 : index
    %c235_121 = arith.constant 235 : index
    %297 = vector.load %arg3[%c0_119, %c0_120, %c235_121] : memref<2x8x324xf32, #tpu.memory_space<vmem>>, vector<2x8x16xf32>
    tpu.vector_store %arg3[%c0_119, %c0_120, %c235_121], %296 {strides = array<i32>} : memref<2x8x324xf32, #tpu.memory_space<vmem>>, vector<2x8x16xf32>,
    %c0_122 = arith.constant 0 : index
    %c0_123 = arith.constant 0 : index
    %c208 = arith.constant 208 : index
    %298 = vector.load %arg1[%c0_122, %c0_123, %c208] : memref<2x3x256xf32, #tpu.memory_space<vmem>>, vector<2x3x16xf32>
    %c0_124 = arith.constant 0 : index
    %c0_125 = arith.constant 0 : index
    %c253 = arith.constant 253 : index
    %299 = vector.load %arg2[%c0_124, %c0_125, %c253] : memref<2x8x324xf32, #tpu.memory_space<vmem>>, vector<2x8x16xf32>
    %300 = arith.addf %299, %7 : vector<2x8x16xf32>
    %301 = vector.extract_strided_slice %298 {offsets = [0, 0, 0], sizes = [2, 1, 16], strides = [1, 1, 1]} : vector<2x3x16xf32> to vector<2x1x16xf32>
    %302 = vector.shape_cast %301 : vector<2x1x16xf32> to vector<2x1x16xf32>
    %303 = vector.broadcast %302 : vector<2x1x16xf32> to vector<2x8x16xf32>
    %304 = arith.mulf %11, %303 : vector<2x8x16xf32>
    %305 = arith.addf %300, %304 : vector<2x8x16xf32>
    %306 = vector.extract_strided_slice %298 {offsets = [0, 1, 0], sizes = [2, 1, 16], strides = [1, 1, 1]} : vector<2x3x16xf32> to vector<2x1x16xf32>
    %307 = vector.shape_cast %306 : vector<2x1x16xf32> to vector<2x1x16xf32>
    %308 = vector.broadcast %307 : vector<2x1x16xf32> to vector<2x8x16xf32>
    %309 = arith.mulf %15, %308 : vector<2x8x16xf32>
    %310 = arith.addf %305, %309 : vector<2x8x16xf32>
    %311 = vector.extract_strided_slice %298 {offsets = [0, 2, 0], sizes = [2, 1, 16], strides = [1, 1, 1]} : vector<2x3x16xf32> to vector<2x1x16xf32>
    %312 = vector.shape_cast %311 : vector<2x1x16xf32> to vector<2x1x16xf32>
    %313 = vector.broadcast %312 : vector<2x1x16xf32> to vector<2x8x16xf32>
    %314 = arith.mulf %19, %313 : vector<2x8x16xf32>
    %315 = arith.addf %310, %314 : vector<2x8x16xf32>
    %cst_126 = arith.constant 0.000000e+00 : f32
    %316 = vector.broadcast %cst_126 : f32 to vector<2x8x16xf32>
    %317 = arith.maximumf %315, %316 : vector<2x8x16xf32>
    %c0_127 = arith.constant 0 : index
    %c0_128 = arith.constant 0 : index
    %c253_129 = arith.constant 253 : index
    %318 = vector.load %arg3[%c0_127, %c0_128, %c253_129] : memref<2x8x324xf32, #tpu.memory_space<vmem>>, vector<2x8x16xf32>
    tpu.vector_store %arg3[%c0_127, %c0_128, %c253_129], %317 {strides = array<i32>} : memref<2x8x324xf32, #tpu.memory_space<vmem>>, vector<2x8x16xf32>,
    %c0_130 = arith.constant 0 : index
    %c0_131 = arith.constant 0 : index
    %c224 = arith.constant 224 : index
    %319 = vector.load %arg1[%c0_130, %c0_131, %c224] : memref<2x3x256xf32, #tpu.memory_space<vmem>>, vector<2x3x16xf32>
    %c0_132 = arith.constant 0 : index
    %c0_133 = arith.constant 0 : index
    %c271 = arith.constant 271 : index
    %320 = vector.load %arg2[%c0_132, %c0_133, %c271] : memref<2x8x324xf32, #tpu.memory_space<vmem>>, vector<2x8x16xf32>
    %321 = arith.addf %320, %7 : vector<2x8x16xf32>
    %322 = vector.extract_strided_slice %319 {offsets = [0, 0, 0], sizes = [2, 1, 16], strides = [1, 1, 1]} : vector<2x3x16xf32> to vector<2x1x16xf32>
    %323 = vector.shape_cast %322 : vector<2x1x16xf32> to vector<2x1x16xf32>
    %324 = vector.broadcast %323 : vector<2x1x16xf32> to vector<2x8x16xf32>
    %325 = arith.mulf %11, %324 : vector<2x8x16xf32>
    %326 = arith.addf %321, %325 : vector<2x8x16xf32>
    %327 = vector.extract_strided_slice %319 {offsets = [0, 1, 0], sizes = [2, 1, 16], strides = [1, 1, 1]} : vector<2x3x16xf32> to vector<2x1x16xf32>
    %328 = vector.shape_cast %327 : vector<2x1x16xf32> to vector<2x1x16xf32>
    %329 = vector.broadcast %328 : vector<2x1x16xf32> to vector<2x8x16xf32>
    %330 = arith.mulf %15, %329 : vector<2x8x16xf32>
    %331 = arith.addf %326, %330 : vector<2x8x16xf32>
    %332 = vector.extract_strided_slice %319 {offsets = [0, 2, 0], sizes = [2, 1, 16], strides = [1, 1, 1]} : vector<2x3x16xf32> to vector<2x1x16xf32>
    %333 = vector.shape_cast %332 : vector<2x1x16xf32> to vector<2x1x16xf32>
    %334 = vector.broadcast %333 : vector<2x1x16xf32> to vector<2x8x16xf32>
    %335 = arith.mulf %19, %334 : vector<2x8x16xf32>
    %336 = arith.addf %331, %335 : vector<2x8x16xf32>
    %cst_134 = arith.constant 0.000000e+00 : f32
    %337 = vector.broadcast %cst_134 : f32 to vector<2x8x16xf32>
    %338 = arith.maximumf %336, %337 : vector<2x8x16xf32>
    %c0_135 = arith.constant 0 : index
    %c0_136 = arith.constant 0 : index
    %c271_137 = arith.constant 271 : index
    %339 = vector.load %arg3[%c0_135, %c0_136, %c271_137] : memref<2x8x324xf32, #tpu.memory_space<vmem>>, vector<2x8x16xf32>
    tpu.vector_store %arg3[%c0_135, %c0_136, %c271_137], %338 {strides = array<i32>} : memref<2x8x324xf32, #tpu.memory_space<vmem>>, vector<2x8x16xf32>,
    %c0_138 = arith.constant 0 : index
    %c0_139 = arith.constant 0 : index
    %c240 = arith.constant 240 : index
    %340 = vector.load %arg1[%c0_138, %c0_139, %c240] : memref<2x3x256xf32, #tpu.memory_space<vmem>>, vector<2x3x16xf32>
    %c0_140 = arith.constant 0 : index
    %c0_141 = arith.constant 0 : index
    %c289 = arith.constant 289 : index
    %341 = vector.load %arg2[%c0_140, %c0_141, %c289] : memref<2x8x324xf32, #tpu.memory_space<vmem>>, vector<2x8x16xf32>
    %342 = arith.addf %341, %7 : vector<2x8x16xf32>
    %343 = vector.extract_strided_slice %340 {offsets = [0, 0, 0], sizes = [2, 1, 16], strides = [1, 1, 1]} : vector<2x3x16xf32> to vector<2x1x16xf32>
    %344 = vector.shape_cast %343 : vector<2x1x16xf32> to vector<2x1x16xf32>
    %345 = vector.broadcast %344 : vector<2x1x16xf32> to vector<2x8x16xf32>
    %346 = arith.mulf %11, %345 : vector<2x8x16xf32>
    %347 = arith.addf %342, %346 : vector<2x8x16xf32>
    %348 = vector.extract_strided_slice %340 {offsets = [0, 1, 0], sizes = [2, 1, 16], strides = [1, 1, 1]} : vector<2x3x16xf32> to vector<2x1x16xf32>
    %349 = vector.shape_cast %348 : vector<2x1x16xf32> to vector<2x1x16xf32>
    %350 = vector.broadcast %349 : vector<2x1x16xf32> to vector<2x8x16xf32>
    %351 = arith.mulf %15, %350 : vector<2x8x16xf32>
    %352 = arith.addf %347, %351 : vector<2x8x16xf32>
    %353 = vector.extract_strided_slice %340 {offsets = [0, 2, 0], sizes = [2, 1, 16], strides = [1, 1, 1]} : vector<2x3x16xf32> to vector<2x1x16xf32>
    %354 = vector.shape_cast %353 : vector<2x1x16xf32> to vector<2x1x16xf32>
    %355 = vector.broadcast %354 : vector<2x1x16xf32> to vector<2x8x16xf32>
    %356 = arith.mulf %19, %355 : vector<2x8x16xf32>
    %357 = arith.addf %352, %356 : vector<2x8x16xf32>
    %cst_142 = arith.constant 0.000000e+00 : f32
    %358 = vector.broadcast %cst_142 : f32 to vector<2x8x16xf32>
    %359 = arith.maximumf %357, %358 : vector<2x8x16xf32>
    %c0_143 = arith.constant 0 : index
    %c0_144 = arith.constant 0 : index
    %c289_145 = arith.constant 289 : index
    %360 = vector.load %arg3[%c0_143, %c0_144, %c289_145] : memref<2x8x324xf32, #tpu.memory_space<vmem>>, vector<2x8x16xf32>
    tpu.vector_store %arg3[%c0_143, %c0_144, %c289_145], %359 {strides = array<i32>} : memref<2x8x324xf32, #tpu.memory_space<vmem>>, vector<2x8x16xf32>,
    return
  }
}

</mosaic_0001>

<llo_original>
// kernel: conv1x1_pad1_add_relu.1
$region0: #{conv1x1_pad1_add_relu.1}
  #allocation0 [shape = 'u32[]', space=smem, size = 0x4, offset = 0x4, fixed_abs, tag = 'smem constant byte address 0x4 - core index']
  #allocation1 [shape = 'u32[144,128]{1,0:T(1,128)}', space=vmem, size = 0x12000, scoped, tag = 'internal scratch']
  %s0 = inlined_call_operand.vmem [shape: f32[4,8,1], index: 0, kind: input, shape index: {}]
  %s1 = inlined_call_operand.vmem [shape: f32[2,3,256], index: 1, kind: input, shape index: {}]
  %s2 = inlined_call_operand.vmem [shape: f32[2,8,324], index: 2, kind: input, shape index: {}]
  %s3 = inlined_call_operand.vmem [shape: f32[2,8,324], index: 3, kind: output, shape index: {}]
  %s4 = sld [smem:[#allocation0]]
  $region22: #{conv1x1_pad1_add_relu.1} parent=0
    _
  %s6 = ssub.s32 1, %s4
  %s7 = scalar_select 0, %s6, %s4
  // Predicated region
  $region2: #{conv1x1_pad1_add_relu.1} parent=0 // pred_check
    _
  $region3: #{conv1x1_pad1_add_relu.1} parent=0 // pred_check_branch
    %9 = sbr.rel (0) target = $region5
  $region4: #{conv1x1_pad1_add_relu.1} parent=0 // pred_region
    _
  $region5: #{conv1x1_pad1_add_relu.1} parent=0 // pred_fallthru
    _
  // Predicated region
  $region6: #{conv1x1_pad1_add_relu.1} parent=0 // pred_check
    _
  $region7: #{conv1x1_pad1_add_relu.1} parent=0 // pred_check_branch
    %11 = sbr.rel (0) target = $region9
  $region8: #{conv1x1_pad1_add_relu.1} parent=0 // pred_region
    _
  $region9: #{conv1x1_pad1_add_relu.1} parent=0 // pred_fallthru
    _
  // Predicated region
  $region10: #{conv1x1_pad1_add_relu.1} parent=0 // pred_check
    _
  $region11: #{conv1x1_pad1_add_relu.1} parent=0 // pred_check_branch
    %13 = sbr.rel (0) target = $region13
  $region12: #{conv1x1_pad1_add_relu.1} parent=0 // pred_region
    _
  $region13: #{conv1x1_pad1_add_relu.1} parent=0 // pred_fallthru
    _
  %s14 = scalar_lea.vmem %s0, 24
  %v15 = vld [vmem:[%s14] sm:$0xff]
  %17 = vset.pattern.permute.xlu0 0
  %18 = vperm.xlu0 %17, %v15
  %v19 = vpop.permute.xlu0 %18
  %v21 = vld [vmem:[%s0] sm:$0xff]
  %23 = vset.pattern.permute.xlu0 0
  %24 = vperm.xlu0 %23, %v21
  %v25 = vpop.permute.xlu0 %24
  %s27 = scalar_lea.vmem %s0, 8
  %v28 = vld [vmem:[%s27] sm:$0xff]
  %30 = vset.pattern.permute.xlu0 0
  %31 = vperm.xlu0 %30, %v28
  %v32 = vpop.permute.xlu0 %31
  %s34 = scalar_lea.vmem %s0, 16
  %v35 = vld [vmem:[%s34] sm:$0xff]
  %37 = vset.pattern.permute.xlu0 0
  %38 = vperm.xlu0 %37, %v35
  %v39 = vpop.permute.xlu0 %38
  %v41 = vld [vmem:[%s2] sm:$0xff]
  %v42 = vld [vmem:[%s2 + $0x8] sm:$0xff]
  %v43 = vld [vmem:[%s2 + $0x10] sm:$0xff]
  %v44 = vld [vmem:[%s2 + $0x18] sm:$0xff]
  %v45 = vld [vmem:[%s2 + $0x20] sm:$0xff]
  %v46 = vld [vmem:[%s2 + $0x28] sm:$0xff]
  %v47 = vadd.f32 %v41, %v19
  %v48 = vadd.f32 %v42, %v19
  %v49 = vadd.f32 %v43, %v19
  %v50 = vadd.f32 %v44, %v19
  %v51 = vadd.f32 %v45, %v19
  %v52 = vadd.f32 %v46, %v19
  %v53 = vmax.f32 %v47, 0.0
  %v54 = vmax.f32 %v48, 0.0
  %v55 = vmax.f32 %v49, 0.0
  %v56 = vmax.f32 %v50, 0.0
  %v57 = vmax.f32 %v51, 0.0
  %v58 = vmax.f32 %v52, 0.0
  %59 = vst [vmem:[%s3] sm:$0xff] %v53
  %60 = vst [vmem:[%s3 + $0x8] sm:$0xff] %v54
  %vm61 = vcmask 556032
  %62 = vst.msk [vmem:[%s3 + $0x10] sm:$0xff] %vm61, %v55
  %63 = vst [vmem:[%s3 + $0x18] sm:$0xff] %v56
  %64 = vst [vmem:[%s3 + $0x20] sm:$0xff] %v57
  %65 = vst.msk [vmem:[%s3 + $0x28] sm:$0xff] %vm61, %v58
  %v66 = vld [vmem:[%s1] sm:$0x7]
  %v67 = vld [vmem:[%s1 + $0x8] sm:$0x7]
  %v68 = vld [vmem:[%s2] sm:$0xff]
  %v69 = vld [vmem:[%s2 + $0x18] sm:$0xff]
  %v70 = vadd.f32 %v68, %v19
  %v71 = vadd.f32 %v69, %v19
  %v72 = vlaneseq
  %v73 = vshrl.u32 %v72, 7
  %v74 = vsub.s32 0, %v73
  %v75 = vrot.slane %v66, %v74
  %v76 = vlaneseq
  %v77 = vshrl.u32 %v76, 7
  %v78 = vsub.s32 0, %v77
  %v79 = vrot.slane %v67, %v78
  %v80 = vmul.f32 %v25, %v75
  %v81 = vmul.f32 %v25, %v79
  %84 = vrot.lane.b32.xlu0 %v80, 19
  %v85 = vpop.permute.xlu0 %84
  %86 = vrot.lane.b32.xlu0 %v81, 19
  %v87 = vpop.permute.xlu0 %86
  %v90 = vadd.f32 %v70, %v85
  %v91 = vadd.f32 %v71, %v87
  %v92 = vlaneseq
  %v93 = vshrl.u32 %v92, 7
  %v94 = vsub.s32 1, %v93
  %v95 = vrot.slane %v66, %v94
  %v96 = vlaneseq
  %v97 = vshrl.u32 %v96, 7
  %v98 = vsub.s32 1, %v97
  %v99 = vrot.slane %v67, %v98
  %v100 = vmul.f32 %v32, %v95
  %v101 = vmul.f32 %v32, %v99
  %104 = vrot.lane.b32.xlu0 %v100, 19
  %v105 = vpop.permute.xlu0 %104
  %106 = vrot.lane.b32.xlu0 %v101, 19
  %v107 = vpop.permute.xlu0 %106
  %v110 = vadd.f32 %v90, %v105
  %v111 = vadd.f32 %v91, %v107
  %v112 = vlaneseq
  %v113 = vshrl.u32 %v112, 7
  %v114 = vsub.s32 2, %v113
  %v115 = vrot.slane %v66, %v114
  %v116 = vlaneseq
  %v117 = vshrl.u32 %v116, 7
  %v118 = vsub.s32 2, %v117
  %v119 = vrot.slane %v67, %v118
  %v120 = vmul.f32 %v39, %v115
  %v121 = vmul.f32 %v39, %v119
  %124 = vrot.lane.b32.xlu0 %v120, 19
  %v125 = vpop.permute.xlu0 %124
  %126 = vrot.lane.b32.xlu0 %v121, 19
  %v127 = vpop.permute.xlu0 %126
  %v130 = vadd.f32 %v110, %v125
  %v131 = vadd.f32 %v111, %v127
  %v132 = vmax.f32 %v130, 0.0
  %v133 = vmax.f32 %v131, 0.0
  %vm134 = vcmask 285848
  %135 = vst.msk [vmem:[%s3] sm:$0xff] %vm134, %v132
  %136 = vst.msk [vmem:[%s3 + $0x18] sm:$0xff] %vm134, %v133
  %v137 = vld [vmem:[%s1] sm:$0x7]
  %v138 = vld [vmem:[%s1 + $0x8] sm:$0x7]
  %v139 = vld [vmem:[%s2] sm:$0xff]
  %v140 = vld [vmem:[%s2 + $0x18] sm:$0xff]
  %v141 = vadd.f32 %v139, %v19
  %v142 = vadd.f32 %v140, %v19
  %v143 = vlaneseq
  %v144 = vshrl.u32 %v143, 7
  %v145 = vsub.s32 0, %v144
  %v146 = vrot.slane %v137, %v145
  %v147 = vlaneseq
  %v148 = vshrl.u32 %v147, 7
  %v149 = vsub.s32 0, %v148
  %v150 = vrot.slane %v138, %v149
  %v151 = vmul.f32 %v25, %v146
  %v152 = vmul.f32 %v25, %v150
  %155 = vrot.lane.b32.xlu0 %v151, 21
  %v156 = vpop.permute.xlu0 %155
  %157 = vrot.lane.b32.xlu0 %v152, 21
  %v158 = vpop.permute.xlu0 %157
  %v161 = vadd.f32 %v141, %v156
  %v162 = vadd.f32 %v142, %v158
  %v163 = vlaneseq
  %v164 = vshrl.u32 %v163, 7
  %v165 = vsub.s32 1, %v164
  %v166 = vrot.slane %v137, %v165
  %v167 = vlaneseq
  %v168 = vshrl.u32 %v167, 7
  %v169 = vsub.s32 1, %v168
  %v170 = vrot.slane %v138, %v169
  %v171 = vmul.f32 %v32, %v166
  %v172 = vmul.f32 %v32, %v170
  %175 = vrot.lane.b32.xlu0 %v171, 21
  %v176 = vpop.permute.xlu0 %175
  %177 = vrot.lane.b32.xlu0 %v172, 21
  %v178 = vpop.permute.xlu0 %177
  %v181 = vadd.f32 %v161, %v176
  %v182 = vadd.f32 %v162, %v178
  %v183 = vlaneseq
  %v184 = vshrl.u32 %v183, 7
  %v185 = vsub.s32 2, %v184
  %v186 = vrot.slane %v137, %v185
  %v187 = vlaneseq
  %v188 = vshrl.u32 %v187, 7
  %v189 = vsub.s32 2, %v188
  %v190 = vrot.slane %v138, %v189
  %v191 = vmul.f32 %v39, %v186
  %v192 = vmul.f32 %v39, %v190
  %195 = vrot.lane.b32.xlu0 %v191, 21
  %v196 = vpop.permute.xlu0 %195
  %197 = vrot.lane.b32.xlu0 %v192, 21
  %v198 = vpop.permute.xlu0 %197
  %v201 = vadd.f32 %v181, %v196
  %v202 = vadd.f32 %v182, %v198
  %v203 = vmax.f32 %v201, 0.0
  %v204 = vmax.f32 %v202, 0.0
  %vm205 = vcmask 433448
  %206 = vst.msk [vmem:[%s3] sm:$0xff] %vm205, %v203
  %207 = vst.msk [vmem:[%s3 + $0x18] sm:$0xff] %vm205, %v204
  %v208 = vld [vmem:[%s1] sm:$0x7]
  %v209 = vld [vmem:[%s1 + $0x8] sm:$0x7]
  %v210 = vld [vmem:[%s2] sm:$0xff]
  %v211 = vld [vmem:[%s2 + $0x18] sm:$0xff]
  %v212 = vadd.f32 %v210, %v19
  %v213 = vadd.f32 %v211, %v19
  %v214 = vlaneseq
  %v215 = vshrl.u32 %v214, 7
  %v216 = vsub.s32 0, %v215
  %v217 = vrot.slane %v208, %v216
  %v218 = vlaneseq
  %v219 = vshrl.u32 %v218, 7
  %v220 = vsub.s32 0, %v219
  %v221 = vrot.slane %v209, %v220
  %v222 = vmul.f32 %v25, %v217
  %v223 = vmul.f32 %v25, %v221
  %226 = vrot.lane.b32.xlu0 %v222, 23
  %v227 = vpop.permute.xlu0 %226
  %228 = vrot.lane.b32.xlu0 %v223, 23
  %v229 = vpop.permute.xlu0 %228
  %v232 = vadd.f32 %v212, %v227
  %v233 = vadd.f32 %v213, %v229
  %v234 = vlaneseq
  %v235 = vshrl.u32 %v234, 7
  %v236 = vsub.s32 1, %v235
  %v237 = vrot.slane %v208, %v236
  %v238 = vlaneseq
  %v239 = vshrl.u32 %v238, 7
  %v240 = vsub.s32 1, %v239
  %v241 = vrot.slane %v209, %v240
  %v242 = vmul.f32 %v32, %v237
  %v243 = vmul.f32 %v32, %v241
  %246 = vrot.lane.b32.xlu0 %v242, 23
  %v247 = vpop.permute.xlu0 %246
  %248 = vrot.lane.b32.xlu0 %v243, 23
  %v249 = vpop.permute.xlu0 %248
  %v252 = vadd.f32 %v232, %v247
  %v253 = vadd.f32 %v233, %v249
  %v254 = vlaneseq
  %v255 = vshrl.u32 %v254, 7
  %v256 = vsub.s32 2, %v255
  %v257 = vrot.slane %v208, %v256
  %v258 = vlaneseq
  %v259 = vshrl.u32 %v258, 7
  %v260 = vsub.s32 2, %v259
  %v261 = vrot.slane %v209, %v260
  %v262 = vmul.f32 %v39, %v257
  %v263 = vmul.f32 %v39, %v261
  %266 = vrot.lane.b32.xlu0 %v262, 23
  %v267 = vpop.permute.xlu0 %266
  %268 = vrot.lane.b32.xlu0 %v263, 23
  %v269 = vpop.permute.xlu0 %268
  %v272 = vadd.f32 %v252, %v267
  %v273 = vadd.f32 %v253, %v269
  %v274 = vmax.f32 %v272, 0.0
  %v275 = vmax.f32 %v273, 0.0
  %vm276 = vcmask 581048
  %277 = vst.msk [vmem:[%s3] sm:$0xff] %vm276, %v274
  %278 = vst.msk [vmem:[%s3 + $0x18] sm:$0xff] %vm276, %v275
  %v279 = vld [vmem:[%s1] sm:$0x7]
  %v280 = vld [vmem:[%s1 + $0x8] sm:$0x7]
  %v281 = vld [vmem:[%s2] sm:$0xff]
  %v282 = vld [vmem:[%s2 + $0x18] sm:$0xff]
  %v283 = vadd.f32 %v281, %v19
  %v284 = vadd.f32 %v282, %v19
  %v285 = vlaneseq
  %v286 = vshrl.u32 %v285, 7
  %v287 = vsub.s32 0, %v286
  %v288 = vrot.slane %v279, %v287
  %v289 = vlaneseq
  %v290 = vshrl.u32 %v289, 7
  %v291 = vsub.s32 0, %v290
  %v292 = vrot.slane %v280, %v291
  %v293 = vmul.f32 %v25, %v288
  %v294 = vmul.f32 %v25, %v292
  %297 = vrot.lane.b32.xlu0 %v293, 25
  %v298 = vpop.permute.xlu0 %297
  %299 = vrot.lane.b32.xlu0 %v294, 25
  %v300 = vpop.permute.xlu0 %299
  %v303 = vadd.f32 %v283, %v298
  %v304 = vadd.f32 %v284, %v300
  %v305 = vlaneseq
  %v306 = vshrl.u32 %v305, 7
  %v307 = vsub.s32 1, %v306
  %v308 = vrot.slane %v279, %v307
  %v309 = vlaneseq
  %v310 = vshrl.u32 %v309, 7
  %v311 = vsub.s32 1, %v310
  %v312 = vrot.slane %v280, %v311
  %v313 = vmul.f32 %v32, %v308
  %v314 = vmul.f32 %v32, %v312
  %317 = vrot.lane.b32.xlu0 %v313, 25
  %v318 = vpop.permute.xlu0 %317
  %319 = vrot.lane.b32.xlu0 %v314, 25
  %v320 = vpop.permute.xlu0 %319
  %v323 = vadd.f32 %v303, %v318
  %v324 = vadd.f32 %v304, %v320
  %v325 = vlaneseq
  %v326 = vshrl.u32 %v325, 7
  %v327 = vsub.s32 2, %v326
  %v328 = vrot.slane %v279, %v327
  %v329 = vlaneseq
  %v330 = vshrl.u32 %v329, 7
  %v331 = vsub.s32 2, %v330
  %v332 = vrot.slane %v280, %v331
  %v333 = vmul.f32 %v39, %v328
  %v334 = vmul.f32 %v39, %v332
  %337 = vrot.lane.b32.xlu0 %v333, 25
  %v338 = vpop.permute.xlu0 %337
  %339 = vrot.lane.b32.xlu0 %v334, 25
  %v340 = vpop.permute.xlu0 %339
  %v343 = vadd.f32 %v323, %v338
  %v344 = vadd.f32 %v324, %v340
  %v345 = vmax.f32 %v343, 0.0
  %v346 = vmax.f32 %v344, 0.0
  %vm347 = vcmask 728648
  %348 = vst.msk [vmem:[%s3] sm:$0xff] %vm347, %v345
  %349 = vst.msk [vmem:[%s3 + $0x18] sm:$0xff] %vm347, %v346
  %v350 = vld [vmem:[%s1] sm:$0x7]
  %v351 = vld [vmem:[%s1 + $0x8] sm:$0x7]
  %v352 = vld [vmem:[%s2] sm:$0xff]
  %v353 = vld [vmem:[%s2 + $0x18] sm:$0xff]
  %v354 = vadd.f32 %v352, %v19
  %v355 = vadd.f32 %v353, %v19
  %v356 = vlaneseq
  %v357 = vshrl.u32 %v356, 7
  %v358 = vsub.s32 0, %v357
  %v359 = vrot.slane %v350, %v358
  %v360 = vlaneseq
  %v361 = vshrl.u32 %v360, 7
  %v362 = vsub.s32 0, %v361
  %v363 = vrot.slane %v351, %v362
  %v364 = vmul.f32 %v25, %v359
  %v365 = vmul.f32 %v25, %v363
  %368 = vrot.lane.b32.xlu0 %v364, 27
  %v369 = vpop.permute.xlu0 %368
  %370 = vrot.lane.b32.xlu0 %v365, 27
  %v371 = vpop.permute.xlu0 %370
  %v374 = vadd.f32 %v354, %v369
  %v375 = vadd.f32 %v355, %v371
  %v376 = vlaneseq
  %v377 = vshrl.u32 %v376, 7
  %v378 = vsub.s32 1, %v377
  %v379 = vrot.slane %v350, %v378
  %v380 = vlaneseq
  %v381 = vshrl.u32 %v380, 7
  %v382 = vsub.s32 1, %v381
  %v383 = vrot.slane %v351, %v382
  %v384 = vmul.f32 %v32, %v379
  %v385 = vmul.f32 %v32, %v383
  %388 = vrot.lane.b32.xlu0 %v384, 27
  %v389 = vpop.permute.xlu0 %388
  %390 = vrot.lane.b32.xlu0 %v385, 27
  %v391 = vpop.permute.xlu0 %390
  %v394 = vadd.f32 %v374, %v389
  %v395 = vadd.f32 %v375, %v391
  %v396 = vlaneseq
  %v397 = vshrl.u32 %v396, 7
  %v398 = vsub.s32 2, %v397
  %v399 = vrot.slane %v350, %v398
  %v400 = vlaneseq
  %v401 = vshrl.u32 %v400, 7
  %v402 = vsub.s32 2, %v401
  %v403 = vrot.slane %v351, %v402
  %v404 = vmul.f32 %v39, %v399
  %v405 = vmul.f32 %v39, %v403
  %408 = vrot.lane.b32.xlu0 %v404, 27
  %v409 = vpop.permute.xlu0 %408
  %410 = vrot.lane.b32.xlu0 %v405, 27
  %v411 = vpop.permute.xlu0 %410
  %v414 = vadd.f32 %v394, %v409
  %v415 = vadd.f32 %v395, %v411
  %v416 = vmax.f32 %v414, 0.0
  %v417 = vmax.f32 %v415, 0.0
  %vm418 = vcmask 876248
  %419 = vst.msk [vmem:[%s3] sm:$0xff] %vm418, %v416
  %420 = vst.msk [vmem:[%s3 + $0x18] sm:$0xff] %vm418, %v417
  %v421 = vld [vmem:[%s1] sm:$0x7]
  %v422 = vld [vmem:[%s1 + $0x8] sm:$0x7]
  %v423 = vld [vmem:[%s2] sm:$0xff]
  %v424 = vld [vmem:[%s2 + $0x18] sm:$0xff]
  %v425 = vadd.f32 %v423, %v19
  %v426 = vadd.f32 %v424, %v19
  %v427 = vlaneseq
  %v428 = vshrl.u32 %v427, 7
  %v429 = vsub.s32 0, %v428
  %v430 = vrot.slane %v421, %v429
  %v431 = vlaneseq
  %v432 = vshrl.u32 %v431, 7
  %v433 = vsub.s32 0, %v432
  %v434 = vrot.slane %v422, %v433
  %v435 = vmul.f32 %v25, %v430
  %v436 = vmul.f32 %v25, %v434
  %439 = vrot.lane.b32.xlu0 %v435, 29
  %v440 = vpop.permute.xlu0 %439
  %441 = vrot.lane.b32.xlu0 %v436, 29
  %v442 = vpop.permute.xlu0 %441
  %v445 = vadd.f32 %v425, %v440
  %v446 = vadd.f32 %v426, %v442
  %v447 = vlaneseq
  %v448 = vshrl.u32 %v447, 7
  %v449 = vsub.s32 1, %v448
  %v450 = vrot.slane %v421, %v449
  %v451 = vlaneseq
  %v452 = vshrl.u32 %v451, 7
  %v453 = vsub.s32 1, %v452
  %v454 = vrot.slane %v422, %v453
  %v455 = vmul.f32 %v32, %v450
  %v456 = vmul.f32 %v32, %v454
  %459 = vrot.lane.b32.xlu0 %v455, 29
  %v460 = vpop.permute.xlu0 %459
  %461 = vrot.lane.b32.xlu0 %v456, 29
  %v462 = vpop.permute.xlu0 %461
  %v465 = vadd.f32 %v445, %v460
  %v466 = vadd.f32 %v446, %v462
  %v467 = vlaneseq
  %v468 = vshrl.u32 %v467, 7
  %v469 = vsub.s32 2, %v468
  %v470 = vrot.slane %v421, %v469
  %v471 = vlaneseq
  %v472 = vshrl.u32 %v471, 7
  %v473 = vsub.s32 2, %v472
  %v474 = vrot.slane %v422, %v473
  %v475 = vmul.f32 %v39, %v470
  %v476 = vmul.f32 %v39, %v474
  %479 = vrot.lane.b32.xlu0 %v475, 29
  %v480 = vpop.permute.xlu0 %479
  %481 = vrot.lane.b32.xlu0 %v476, 29
  %v482 = vpop.permute.xlu0 %481
  %v485 = vadd.f32 %v465, %v480
  %v486 = vadd.f32 %v466, %v482
  %v487 = vmax.f32 %v485, 0.0
  %v488 = vmax.f32 %v486, 0.0
  %vm489 = vcmask 1023848
  %490 = vst.msk [vmem:[%s3] sm:$0xff] %vm489, %v487
  %491 = vst.msk [vmem:[%s3 + $0x18] sm:$0xff] %vm489, %v488
  %v492 = vld [vmem:[%s1] sm:$0x7]
  %v493 = vld [vmem:[%s1 + $0x8] sm:$0x7]
  %v494 = vld [vmem:[%s2] sm:$0xff]
  %v495 = vld [vmem:[%s2 + $0x8] sm:$0xff]
  %v496 = vld [vmem:[%s2 + $0x18] sm:$0xff]
  %v497 = vld [vmem:[%s2 + $0x20] sm:$0xff]
  %v498 = vadd.f32 %v494, %v19
  %v499 = vadd.f32 %v495, %v19
  %v500 = vadd.f32 %v496, %v19
  %v501 = vadd.f32 %v497, %v19
  %v502 = vlaneseq
  %v503 = vshrl.u32 %v502, 7
  %v504 = vsub.s32 0, %v503
  %v505 = vrot.slane %v492, %v504
  %v506 = vlaneseq
  %v507 = vshrl.u32 %v506, 7
  %v508 = vsub.s32 0, %v507
  %v509 = vrot.slane %v493, %v508
  %v510 = vmul.f32 %v25, %v505
  %v511 = vmul.f32 %v25, %v509
  %514 = vrot.lane.b32.xlu0 %v510, 31
  %v515 = vpop.permute.xlu0 %514
  %516 = vrot.lane.b32.xlu0 %v511, 31
  %v517 = vpop.permute.xlu0 %516
  %v520 = vadd.f32 %v498, %v515
  %v521 = vadd.f32 %v499, %v515
  %v522 = vadd.f32 %v500, %v517
  %v523 = vadd.f32 %v501, %v517
  %v524 = vlaneseq
  %v525 = vshrl.u32 %v524, 7
  %v526 = vsub.s32 1, %v525
  %v527 = vrot.slane %v492, %v526
  %v528 = vlaneseq
  %v529 = vshrl.u32 %v528, 7
  %v530 = vsub.s32 1, %v529
  %v531 = vrot.slane %v493, %v530
  %v532 = vmul.f32 %v32, %v527
  %v533 = vmul.f32 %v32, %v531
  %536 = vrot.lane.b32.xlu0 %v532, 31
  %v537 = vpop.permute.xlu0 %536
  %538 = vrot.lane.b32.xlu0 %v533, 31
  %v539 = vpop.permute.xlu0 %538
  %v542 = vadd.f32 %v520, %v537
  %v543 = vadd.f32 %v521, %v537
  %v544 = vadd.f32 %v522, %v539
  %v545 = vadd.f32 %v523, %v539
  %v546 = vlaneseq
  %v547 = vshrl.u32 %v546, 7
  %v548 = vsub.s32 2, %v547
  %v549 = vrot.slane %v492, %v548
  %v550 = vlaneseq
  %v551 = vshrl.u32 %v550, 7
  %v552 = vsub.s32 2, %v551
  %v553 = vrot.slane %v493, %v552
  %v554 = vmul.f32 %v39, %v549
  %v555 = vmul.f32 %v39, %v553
  %558 = vrot.lane.b32.xlu0 %v554, 31
  %v559 = vpop.permute.xlu0 %558
  %560 = vrot.lane.b32.xlu0 %v555, 31
  %v561 = vpop.permute.xlu0 %560
  %v564 = vadd.f32 %v542, %v559
  %v565 = vadd.f32 %v543, %v559
  %v566 = vadd.f32 %v544, %v561
  %v567 = vadd.f32 %v545, %v561
  %v568 = vmax.f32 %v564, 0.0
  %v569 = vmax.f32 %v565, 0.0
  %v570 = vmax.f32 %v566, 0.0
  %v571 = vmax.f32 %v567, 0.0
  %vm572 = vcmask 1048568
  %573 = vst.msk [vmem:[%s3] sm:$0xff] %vm572, %v568
  %vm574 = vcmask 121856
  %575 = vst.msk [vmem:[%s3 + $0x8] sm:$0xff] %vm574, %v569
  %576 = vst.msk [vmem:[%s3 + $0x18] sm:$0xff] %vm572, %v570
  %577 = vst.msk [vmem:[%s3 + $0x20] sm:$0xff] %vm574, %v571
  %v578 = vld [vmem:[%s1] sm:$0x7]
  %v579 = vld [vmem:[%s1 + $0x8] sm:$0x7]
  %v580 = vld [vmem:[%s2 + $0x8] sm:$0xff]
  %v581 = vld [vmem:[%s2 + $0x20] sm:$0xff]
  %v582 = vadd.f32 %v580, %v19
  %v583 = vadd.f32 %v581, %v19
  %v584 = vlaneseq
  %v585 = vshrl.u32 %v584, 7
  %v586 = vsub.s32 0, %v585
  %v587 = vrot.slane %v578, %v586
  %v588 = vlaneseq
  %v589 = vshrl.u32 %v588, 7
  %v590 = vsub.s32 0, %v589
  %v591 = vrot.slane %v579, %v590
  %v592 = vmul.f32 %v25, %v587
  %v593 = vmul.f32 %v25, %v591
  %596 = vrot.lane.b32.xlu0 %v592, 33
  %v597 = vpop.permute.xlu0 %596
  %598 = vrot.lane.b32.xlu0 %v593, 33
  %v599 = vpop.permute.xlu0 %598
  %v602 = vadd.f32 %v582, %v597
  %v603 = vadd.f32 %v583, %v599
  %v604 = vlaneseq
  %v605 = vshrl.u32 %v604, 7
  %v606 = vsub.s32 1, %v605
  %v607 = vrot.slane %v578, %v606
  %v608 = vlaneseq
  %v609 = vshrl.u32 %v608, 7
  %v610 = vsub.s32 1, %v609
  %v611 = vrot.slane %v579, %v610
  %v612 = vmul.f32 %v32, %v607
  %v613 = vmul.f32 %v32, %v611
  %616 = vrot.lane.b32.xlu0 %v612, 33
  %v617 = vpop.permute.xlu0 %616
  %618 = vrot.lane.b32.xlu0 %v613, 33
  %v619 = vpop.permute.xlu0 %618
  %v622 = vadd.f32 %v602, %v617
  %v623 = vadd.f32 %v603, %v619
  %v624 = vlaneseq
  %v625 = vshrl.u32 %v624, 7
  %v626 = vsub.s32 2, %v625
  %v627 = vrot.slane %v578, %v626
  %v628 = vlaneseq
  %v629 = vshrl.u32 %v628, 7
  %v630 = vsub.s32 2, %v629
  %v631 = vrot.slane %v579, %v630
  %v632 = vmul.f32 %v39, %v627
  %v633 = vmul.f32 %v39, %v631
  %636 = vrot.lane.b32.xlu0 %v632, 33
  %v637 = vpop.permute.xlu0 %636
  %638 = vrot.lane.b32.xlu0 %v633, 33
  %v639 = vpop.permute.xlu0 %638
  %v642 = vadd.f32 %v622, %v637
  %v643 = vadd.f32 %v623, %v639
  %v644 = vmax.f32 %v642, 0.0
  %v645 = vmax.f32 %v643, 0.0
  %vm646 = vcmask 269448
  %647 = vst.msk [vmem:[%s3 + $0x8] sm:$0xff] %vm646, %v644
  %648 = vst.msk [vmem:[%s3 + $0x20] sm:$0xff] %vm646, %v645
  %v649 = vld [vmem:[%s1 + $0x4] sm:$0x7]
  %v650 = vld [vmem:[%s1 + $0xc] sm:$0x7]
  %v651 = vld [vmem:[%s2 + $0x8] sm:$0xff]
  %v652 = vld [vmem:[%s2 + $0x20] sm:$0xff]
  %v653 = vadd.f32 %v651, %v19
  %v654 = vadd.f32 %v652, %v19
  %v655 = vlaneseq
  %v656 = vshrl.u32 %v655, 7
  %v657 = vsub.s32 0, %v656
  %v658 = vrot.slane %v649, %v657
  %v659 = vlaneseq
  %v660 = vshrl.u32 %v659, 7
  %v661 = vsub.s32 0, %v660
  %v662 = vrot.slane %v650, %v661
  %v663 = vmul.f32 %v25, %v658
  %v664 = vmul.f32 %v25, %v662
  %667 = vrot.lane.b32.xlu0 %v663, 35
  %v668 = vpop.permute.xlu0 %667
  %669 = vrot.lane.b32.xlu0 %v664, 35
  %v670 = vpop.permute.xlu0 %669
  %v673 = vadd.f32 %v653, %v668
  %v674 = vadd.f32 %v654, %v670
  %v675 = vlaneseq
  %v676 = vshrl.u32 %v675, 7
  %v677 = vsub.s32 1, %v676
  %v678 = vrot.slane %v649, %v677
  %v679 = vlaneseq
  %v680 = vshrl.u32 %v679, 7
  %v681 = vsub.s32 1, %v680
  %v682 = vrot.slane %v650, %v681
  %v683 = vmul.f32 %v32, %v678
  %v684 = vmul.f32 %v32, %v682
  %687 = vrot.lane.b32.xlu0 %v683, 35
  %v688 = vpop.permute.xlu0 %687
  %689 = vrot.lane.b32.xlu0 %v684, 35
  %v690 = vpop.permute.xlu0 %689
  %v693 = vadd.f32 %v673, %v688
  %v694 = vadd.f32 %v674, %v690
  %v695 = vlaneseq
  %v696 = vshrl.u32 %v695, 7
  %v697 = vsub.s32 2, %v696
  %v698 = vrot.slane %v649, %v697
  %v699 = vlaneseq
  %v700 = vshrl.u32 %v699, 7
  %v701 = vsub.s32 2, %v700
  %v702 = vrot.slane %v650, %v701
  %v703 = vmul.f32 %v39, %v698
  %v704 = vmul.f32 %v39, %v702
  %707 = vrot.lane.b32.xlu0 %v703, 35
  %v708 = vpop.permute.xlu0 %707
  %709 = vrot.lane.b32.xlu0 %v704, 35
  %v710 = vpop.permute.xlu0 %709
  %v713 = vadd.f32 %v693, %v708
  %v714 = vadd.f32 %v694, %v710
  %v715 = vmax.f32 %v713, 0.0
  %v716 = vmax.f32 %v714, 0.0
  %vm717 = vcmask 417048
  %718 = vst.msk [vmem:[%s3 + $0x8] sm:$0xff] %vm717, %v715
  %719 = vst.msk [vmem:[%s3 + $0x20] sm:$0xff] %vm717, %v716
  %v720 = vld [vmem:[%s1 + $0x4] sm:$0x7]
  %v721 = vld [vmem:[%s1 + $0xc] sm:$0x7]
  %v722 = vld [vmem:[%s2 + $0x8] sm:$0xff]
  %v723 = vld [vmem:[%s2 + $0x20] sm:$0xff]
  %v724 = vadd.f32 %v722, %v19
  %v725 = vadd.f32 %v723, %v19
  %v726 = vlaneseq
  %v727 = vshrl.u32 %v726, 7
  %v728 = vsub.s32 0, %v727
  %v729 = vrot.slane %v720, %v728
  %v730 = vlaneseq
  %v731 = vshrl.u32 %v730, 7
  %v732 = vsub.s32 0, %v731
  %v733 = vrot.slane %v721, %v732
  %v734 = vmul.f32 %v25, %v729
  %v735 = vmul.f32 %v25, %v733
  %738 = vrot.lane.b32.xlu0 %v734, 37
  %v739 = vpop.permute.xlu0 %738
  %740 = vrot.lane.b32.xlu0 %v735, 37
  %v741 = vpop.permute.xlu0 %740
  %v744 = vadd.f32 %v724, %v739
  %v745 = vadd.f32 %v725, %v741
  %v746 = vlaneseq
  %v747 = vshrl.u32 %v746, 7
  %v748 = vsub.s32 1, %v747
  %v749 = vrot.slane %v720, %v748
  %v750 = vlaneseq
  %v751 = vshrl.u32 %v750, 7
  %v752 = vsub.s32 1, %v751
  %v753 = vrot.slane %v721, %v752
  %v754 = vmul.f32 %v32, %v749
  %v755 = vmul.f32 %v32, %v753
  %758 = vrot.lane.b32.xlu0 %v754, 37
  %v759 = vpop.permute.xlu0 %758
  %760 = vrot.lane.b32.xlu0 %v755, 37
  %v761 = vpop.permute.xlu0 %760
  %v764 = vadd.f32 %v744, %v759
  %v765 = vadd.f32 %v745, %v761
  %v766 = vlaneseq
  %v767 = vshrl.u32 %v766, 7
  %v768 = vsub.s32 2, %v767
  %v769 = vrot.slane %v720, %v768
  %v770 = vlaneseq
  %v771 = vshrl.u32 %v770, 7
  %v772 = vsub.s32 2, %v771
  %v773 = vrot.slane %v721, %v772
  %v774 = vmul.f32 %v39, %v769
  %v775 = vmul.f32 %v39, %v773
  %778 = vrot.lane.b32.xlu0 %v774, 37
  %v779 = vpop.permute.xlu0 %778
  %780 = vrot.lane.b32.xlu0 %v775, 37
  %v781 = vpop.permute.xlu0 %780
  %v784 = vadd.f32 %v764, %v779
  %v785 = vadd.f32 %v765, %v781
  %v786 = vmax.f32 %v784, 0.0
  %v787 = vmax.f32 %v785, 0.0
  %vm788 = vcmask 564648
  %789 = vst.msk [vmem:[%s3 + $0x8] sm:$0xff] %vm788, %v786
  %790 = vst.msk [vmem:[%s3 + $0x20] sm:$0xff] %vm788, %v787
  %v791 = vld [vmem:[%s1 + $0x4] sm:$0x7]
  %v792 = vld [vmem:[%s1 + $0xc] sm:$0x7]
  %v793 = vld [vmem:[%s2 + $0x8] sm:$0xff]
  %v794 = vld [vmem:[%s2 + $0x20] sm:$0xff]
  %v795 = vadd.f32 %v793, %v19
  %v796 = vadd.f32 %v794, %v19
  %v797 = vlaneseq
  %v798 = vshrl.u32 %v797, 7
  %v799 = vsub.s32 0, %v798
  %v800 = vrot.slane %v791, %v799
  %v801 = vlaneseq
  %v802 = vshrl.u32 %v801, 7
  %v803 = vsub.s32 0, %v802
  %v804 = vrot.slane %v792, %v803
  %v805 = vmul.f32 %v25, %v800
  %v806 = vmul.f32 %v25, %v804
  %809 = vrot.lane.b32.xlu0 %v805, 39
  %v810 = vpop.permute.xlu0 %809
  %811 = vrot.lane.b32.xlu0 %v806, 39
  %v812 = vpop.permute.xlu0 %811
  %v815 = vadd.f32 %v795, %v810
  %v816 = vadd.f32 %v796, %v812
  %v817 = vlaneseq
  %v818 = vshrl.u32 %v817, 7
  %v819 = vsub.s32 1, %v818
  %v820 = vrot.slane %v791, %v819
  %v821 = vlaneseq
  %v822 = vshrl.u32 %v821, 7
  %v823 = vsub.s32 1, %v822
  %v824 = vrot.slane %v792, %v823
  %v825 = vmul.f32 %v32, %v820
  %v826 = vmul.f32 %v32, %v824
  %829 = vrot.lane.b32.xlu0 %v825, 39
  %v830 = vpop.permute.xlu0 %829
  %831 = vrot.lane.b32.xlu0 %v826, 39
  %v832 = vpop.permute.xlu0 %831
  %v835 = vadd.f32 %v815, %v830
  %v836 = vadd.f32 %v816, %v832
  %v837 = vlaneseq
  %v838 = vshrl.u32 %v837, 7
  %v839 = vsub.s32 2, %v838
  %v840 = vrot.slane %v791, %v839
  %v841 = vlaneseq
  %v842 = vshrl.u32 %v841, 7
  %v843 = vsub.s32 2, %v842
  %v844 = vrot.slane %v792, %v843
  %v845 = vmul.f32 %v39, %v840
  %v846 = vmul.f32 %v39, %v844
  %849 = vrot.lane.b32.xlu0 %v845, 39
  %v850 = vpop.permute.xlu0 %849
  %851 = vrot.lane.b32.xlu0 %v846, 39
  %v852 = vpop.permute.xlu0 %851
  %v855 = vadd.f32 %v835, %v850
  %v856 = vadd.f32 %v836, %v852
  %v857 = vmax.f32 %v855, 0.0
  %v858 = vmax.f32 %v856, 0.0
  %vm859 = vcmask 712248
  %860 = vst.msk [vmem:[%s3 + $0x8] sm:$0xff] %vm859, %v857
  %861 = vst.msk [vmem:[%s3 + $0x20] sm:$0xff] %vm859, %v858
  %v862 = vld [vmem:[%s1 + $0x4] sm:$0x7]
  %v863 = vld [vmem:[%s1 + $0xc] sm:$0x7]
  %v864 = vld [vmem:[%s2 + $0x8] sm:$0xff]
  %v865 = vld [vmem:[%s2 + $0x20] sm:$0xff]
  %v866 = vadd.f32 %v864, %v19
  %v867 = vadd.f32 %v865, %v19
  %v868 = vlaneseq
  %v869 = vshrl.u32 %v868, 7
  %v870 = vsub.s32 0, %v869
  %v871 = vrot.slane %v862, %v870
  %v872 = vlaneseq
  %v873 = vshrl.u32 %v872, 7
  %v874 = vsub.s32 0, %v873
  %v875 = vrot.slane %v863, %v874
  %v876 = vmul.f32 %v25, %v871
  %v877 = vmul.f32 %v25, %v875
  %880 = vrot.lane.b32.xlu0 %v876, 41
  %v881 = vpop.permute.xlu0 %880
  %882 = vrot.lane.b32.xlu0 %v877, 41
  %v883 = vpop.permute.xlu0 %882
  %v886 = vadd.f32 %v866, %v881
  %v887 = vadd.f32 %v867, %v883
  %v888 = vlaneseq
  %v889 = vshrl.u32 %v888, 7
  %v890 = vsub.s32 1, %v889
  %v891 = vrot.slane %v862, %v890
  %v892 = vlaneseq
  %v893 = vshrl.u32 %v892, 7
  %v894 = vsub.s32 1, %v893
  %v895 = vrot.slane %v863, %v894
  %v896 = vmul.f32 %v32, %v891
  %v897 = vmul.f32 %v32, %v895
  %900 = vrot.lane.b32.xlu0 %v896, 41
  %v901 = vpop.permute.xlu0 %900
  %902 = vrot.lane.b32.xlu0 %v897, 41
  %v903 = vpop.permute.xlu0 %902
  %v906 = vadd.f32 %v886, %v901
  %v907 = vadd.f32 %v887, %v903
  %v908 = vlaneseq
  %v909 = vshrl.u32 %v908, 7
  %v910 = vsub.s32 2, %v909
  %v911 = vrot.slane %v862, %v910
  %v912 = vlaneseq
  %v913 = vshrl.u32 %v912, 7
  %v914 = vsub.s32 2, %v913
  %v915 = vrot.slane %v863, %v914
  %v916 = vmul.f32 %v39, %v911
  %v917 = vmul.f32 %v39, %v915
  %920 = vrot.lane.b32.xlu0 %v916, 41
  %v921 = vpop.permute.xlu0 %920
  %922 = vrot.lane.b32.xlu0 %v917, 41
  %v923 = vpop.permute.xlu0 %922
  %v926 = vadd.f32 %v906, %v921
  %v927 = vadd.f32 %v907, %v923
  %v928 = vmax.f32 %v926, 0.0
  %v929 = vmax.f32 %v927, 0.0
  %vm930 = vcmask 859848
  %931 = vst.msk [vmem:[%s3 + $0x8] sm:$0xff] %vm930, %v928
  %932 = vst.msk [vmem:[%s3 + $0x20] sm:$0xff] %vm930, %v929
  %v933 = vld [vmem:[%s1 + $0x4] sm:$0x7]
  %v934 = vld [vmem:[%s1 + $0xc] sm:$0x7]
  %v935 = vld [vmem:[%s2 + $0x8] sm:$0xff]
  %v936 = vld [vmem:[%s2 + $0x20] sm:$0xff]
  %v937 = vadd.f32 %v935, %v19
  %v938 = vadd.f32 %v936, %v19
  %v939 = vlaneseq
  %v940 = vshrl.u32 %v939, 7
  %v941 = vsub.s32 0, %v940
  %v942 = vrot.slane %v933, %v941
  %v943 = vlaneseq
  %v944 = vshrl.u32 %v943, 7
  %v945 = vsub.s32 0, %v944
  %v946 = vrot.slane %v934, %v945
  %v947 = vmul.f32 %v25, %v942
  %v948 = vmul.f32 %v25, %v946
  %951 = vrot.lane.b32.xlu0 %v947, 43
  %v952 = vpop.permute.xlu0 %951
  %953 = vrot.lane.b32.xlu0 %v948, 43
  %v954 = vpop.permute.xlu0 %953
  %v957 = vadd.f32 %v937, %v952
  %v958 = vadd.f32 %v938, %v954
  %v959 = vlaneseq
  %v960 = vshrl.u32 %v959, 7
  %v961 = vsub.s32 1, %v960
  %v962 = vrot.slane %v933, %v961
  %v963 = vlaneseq
  %v964 = vshrl.u32 %v963, 7
  %v965 = vsub.s32 1, %v964
  %v966 = vrot.slane %v934, %v965
  %v967 = vmul.f32 %v32, %v962
  %v968 = vmul.f32 %v32, %v966
  %971 = vrot.lane.b32.xlu0 %v967, 43
  %v972 = vpop.permute.xlu0 %971
  %973 = vrot.lane.b32.xlu0 %v968, 43
  %v974 = vpop.permute.xlu0 %973
  %v977 = vadd.f32 %v957, %v972
  %v978 = vadd.f32 %v958, %v974
  %v979 = vlaneseq
  %v980 = vshrl.u32 %v979, 7
  %v981 = vsub.s32 2, %v980
  %v982 = vrot.slane %v933, %v981
  %v983 = vlaneseq
  %v984 = vshrl.u32 %v983, 7
  %v985 = vsub.s32 2, %v984
  %v986 = vrot.slane %v934, %v985
  %v987 = vmul.f32 %v39, %v982
  %v988 = vmul.f32 %v39, %v986
  %991 = vrot.lane.b32.xlu0 %v987, 43
  %v992 = vpop.permute.xlu0 %991
  %993 = vrot.lane.b32.xlu0 %v988, 43
  %v994 = vpop.permute.xlu0 %993
  %v997 = vadd.f32 %v977, %v992
  %v998 = vadd.f32 %v978, %v994
  %v999 = vmax.f32 %v997, 0.0
  %v1000 = vmax.f32 %v998, 0.0
  %vm1001 = vcmask 1007448
  %1002 = vst.msk [vmem:[%s3 + $0x8] sm:$0xff] %vm1001, %v999
  %1003 = vst.msk [vmem:[%s3 + $0x20] sm:$0xff] %vm1001, %v1000
  %v1004 = vld [vmem:[%s1 + $0x4] sm:$0x7]
  %v1005 = vld [vmem:[%s1 + $0xc] sm:$0x7]
  %v1006 = vld [vmem:[%s2 + $0x8] sm:$0xff]
  %v1007 = vld [vmem:[%s2 + $0x10] sm:$0xff]
  %v1008 = vld [vmem:[%s2 + $0x20] sm:$0xff]
  %v1009 = vld [vmem:[%s2 + $0x28] sm:$0xff]
  %v1010 = vadd.f32 %v1006, %v19
  %v1011 = vadd.f32 %v1007, %v19
  %v1012 = vadd.f32 %v1008, %v19
  %v1013 = vadd.f32 %v1009, %v19
  %v1014 = vlaneseq
  %v1015 = vshrl.u32 %v1014, 7
  %v1016 = vsub.s32 0, %v1015
  %v1017 = vrot.slane %v1004, %v1016
  %v1018 = vlaneseq
  %v1019 = vshrl.u32 %v1018, 7
  %v1020 = vsub.s32 0, %v1019
  %v1021 = vrot.slane %v1005, %v1020
  %v1022 = vmul.f32 %v25, %v1017
  %v1023 = vmul.f32 %v25, %v1021
  %1026 = vrot.lane.b32.xlu0 %v1022, 45
  %v1027 = vpop.permute.xlu0 %1026
  %1028 = vrot.lane.b32.xlu0 %v1023, 45
  %v1029 = vpop.permute.xlu0 %1028
  %v1032 = vadd.f32 %v1010, %v1027
  %v1033 = vadd.f32 %v1011, %v1027
  %v1034 = vadd.f32 %v1012, %v1029
  %v1035 = vadd.f32 %v1013, %v1029
  %v1036 = vlaneseq
  %v1037 = vshrl.u32 %v1036, 7
  %v1038 = vsub.s32 1, %v1037
  %v1039 = vrot.slane %v1004, %v1038
  %v1040 = vlaneseq
  %v1041 = vshrl.u32 %v1040, 7
  %v1042 = vsub.s32 1, %v1041
  %v1043 = vrot.slane %v1005, %v1042
  %v1044 = vmul.f32 %v32, %v1039
  %v1045 = vmul.f32 %v32, %v1043
  %1048 = vrot.lane.b32.xlu0 %v1044, 45
  %v1049 = vpop.permute.xlu0 %1048
  %1050 = vrot.lane.b32.xlu0 %v1045, 45
  %v1051 = vpop.permute.xlu0 %1050
  %v1054 = vadd.f32 %v1032, %v1049
  %v1055 = vadd.f32 %v1033, %v1049
  %v1056 = vadd.f32 %v1034, %v1051
  %v1057 = vadd.f32 %v1035, %v1051
  %v1058 = vlaneseq
  %v1059 = vshrl.u32 %v1058, 7
  %v1060 = vsub.s32 2, %v1059
  %v1061 = vrot.slane %v1004, %v1060
  %v1062 = vlaneseq
  %v1063 = vshrl.u32 %v1062, 7
  %v1064 = vsub.s32 2, %v1063
  %v1065 = vrot.slane %v1005, %v1064
  %v1066 = vmul.f32 %v39, %v1061
  %v1067 = vmul.f32 %v39, %v1065
  %1070 = vrot.lane.b32.xlu0 %v1066, 45
  %v1071 = vpop.permute.xlu0 %1070
  %1072 = vrot.lane.b32.xlu0 %v1067, 45
  %v1073 = vpop.permute.xlu0 %1072
  %v1076 = vadd.f32 %v1054, %v1071
  %v1077 = vadd.f32 %v1055, %v1071
  %v1078 = vadd.f32 %v1056, %v1073
  %v1079 = vadd.f32 %v1057, %v1073
  %v1080 = vmax.f32 %v1076, 0.0
  %v1081 = vmax.f32 %v1077, 0.0
  %v1082 = vmax.f32 %v1078, 0.0
  %v1083 = vmax.f32 %v1079, 0.0
  %vm1084 = vcmask 1048552
  %1085 = vst.msk [vmem:[%s3 + $0x8] sm:$0xff] %vm1084, %v1080
  %vm1086 = vcmask 105472
  %1087 = vst.msk [vmem:[%s3 + $0x10] sm:$0xff] %vm1086, %v1081
  %1088 = vst.msk [vmem:[%s3 + $0x20] sm:$0xff] %vm1084, %v1082
  %1089 = vst.msk [vmem:[%s3 + $0x28] sm:$0xff] %vm1086, %v1083
  %v1090 = vld [vmem:[%s1 + $0x4] sm:$0x7]
  %v1091 = vld [vmem:[%s1 + $0xc] sm:$0x7]
  %v1092 = vld [vmem:[%s2 + $0x10] sm:$0xff]
  %v1093 = vld [vmem:[%s2 + $0x28] sm:$0xff]
  %v1094 = vadd.f32 %v1092, %v19
  %v1095 = vadd.f32 %v1093, %v19
  %v1096 = vlaneseq
  %v1097 = vshrl.u32 %v1096, 7
  %v1098 = vsub.s32 0, %v1097
  %v1099 = vrot.slane %v1090, %v1098
  %v1100 = vlaneseq
  %v1101 = vshrl.u32 %v1100, 7
  %v1102 = vsub.s32 0, %v1101
  %v1103 = vrot.slane %v1091, %v1102
  %v1104 = vmul.f32 %v25, %v1099
  %v1105 = vmul.f32 %v25, %v1103
  %1108 = vrot.lane.b32.xlu0 %v1104, 47
  %v1109 = vpop.permute.xlu0 %1108
  %1110 = vrot.lane.b32.xlu0 %v1105, 47
  %v1111 = vpop.permute.xlu0 %1110
  %v1114 = vadd.f32 %v1094, %v1109
  %v1115 = vadd.f32 %v1095, %v1111
  %v1116 = vlaneseq
  %v1117 = vshrl.u32 %v1116, 7
  %v1118 = vsub.s32 1, %v1117
  %v1119 = vrot.slane %v1090, %v1118
  %v1120 = vlaneseq
  %v1121 = vshrl.u32 %v1120, 7
  %v1122 = vsub.s32 1, %v1121
  %v1123 = vrot.slane %v1091, %v1122
  %v1124 = vmul.f32 %v32, %v1119
  %v1125 = vmul.f32 %v32, %v1123
  %1128 = vrot.lane.b32.xlu0 %v1124, 47
  %v1129 = vpop.permute.xlu0 %1128
  %1130 = vrot.lane.b32.xlu0 %v1125, 47
  %v1131 = vpop.permute.xlu0 %1130
  %v1134 = vadd.f32 %v1114, %v1129
  %v1135 = vadd.f32 %v1115, %v1131
  %v1136 = vlaneseq
  %v1137 = vshrl.u32 %v1136, 7
  %v1138 = vsub.s32 2, %v1137
  %v1139 = vrot.slane %v1090, %v1138
  %v1140 = vlaneseq
  %v1141 = vshrl.u32 %v1140, 7
  %v1142 = vsub.s32 2, %v1141
  %v1143 = vrot.slane %v1091, %v1142
  %v1144 = vmul.f32 %v39, %v1139
  %v1145 = vmul.f32 %v39, %v1143
  %1148 = vrot.lane.b32.xlu0 %v1144, 47
  %v1149 = vpop.permute.xlu0 %1148
  %1150 = vrot.lane.b32.xlu0 %v1145, 47
  %v1151 = vpop.permute.xlu0 %1150
  %v1154 = vadd.f32 %v1134, %v1149
  %v1155 = vadd.f32 %v1135, %v1151
  %v1156 = vmax.f32 %v1154, 0.0
  %v1157 = vmax.f32 %v1155, 0.0
  %vm1158 = vcmask 253048
  %1159 = vst.msk [vmem:[%s3 + $0x10] sm:$0xff] %vm1158, %v1156
  %1160 = vst.msk [vmem:[%s3 + $0x28] sm:$0xff] %vm1158, %v1157
  %v1161 = vld [vmem:[%s1 + $0x4] sm:$0x7]
  %v1162 = vld [vmem:[%s1 + $0xc] sm:$0x7]
  %v1163 = vld [vmem:[%s2 + $0x10] sm:$0xff]
  %v1164 = vld [vmem:[%s2 + $0x28] sm:$0xff]
  %v1165 = vadd.f32 %v1163, %v19
  %v1166 = vadd.f32 %v1164, %v19
  %v1167 = vlaneseq
  %v1168 = vshrl.u32 %v1167, 7
  %v1169 = vsub.s32 0, %v1168
  %v1170 = vrot.slane %v1161, %v1169
  %v1171 = vlaneseq
  %v1172 = vshrl.u32 %v1171, 7
  %v1173 = vsub.s32 0, %v1172
  %v1174 = vrot.slane %v1162, %v1173
  %v1175 = vmul.f32 %v25, %v1170
  %v1176 = vmul.f32 %v25, %v1174
  %1179 = vrot.lane.b32.xlu0 %v1175, 49
  %v1180 = vpop.permute.xlu0 %1179
  %1181 = vrot.lane.b32.xlu0 %v1176, 49
  %v1182 = vpop.permute.xlu0 %1181
  %v1185 = vadd.f32 %v1165, %v1180
  %v1186 = vadd.f32 %v1166, %v1182
  %v1187 = vlaneseq
  %v1188 = vshrl.u32 %v1187, 7
  %v1189 = vsub.s32 1, %v1188
  %v1190 = vrot.slane %v1161, %v1189
  %v1191 = vlaneseq
  %v1192 = vshrl.u32 %v1191, 7
  %v1193 = vsub.s32 1, %v1192
  %v1194 = vrot.slane %v1162, %v1193
  %v1195 = vmul.f32 %v32, %v1190
  %v1196 = vmul.f32 %v32, %v1194
  %1199 = vrot.lane.b32.xlu0 %v1195, 49
  %v1200 = vpop.permute.xlu0 %1199
  %1201 = vrot.lane.b32.xlu0 %v1196, 49
  %v1202 = vpop.permute.xlu0 %1201
  %v1205 = vadd.f32 %v1185, %v1200
  %v1206 = vadd.f32 %v1186, %v1202
  %v1207 = vlaneseq
  %v1208 = vshrl.u32 %v1207, 7
  %v1209 = vsub.s32 2, %v1208
  %v1210 = vrot.slane %v1161, %v1209
  %v1211 = vlaneseq
  %v1212 = vshrl.u32 %v1211, 7
  %v1213 = vsub.s32 2, %v1212
  %v1214 = vrot.slane %v1162, %v1213
  %v1215 = vmul.f32 %v39, %v1210
  %v1216 = vmul.f32 %v39, %v1214
  %1219 = vrot.lane.b32.xlu0 %v1215, 49
  %v1220 = vpop.permute.xlu0 %1219
  %1221 = vrot.lane.b32.xlu0 %v1216, 49
  %v1222 = vpop.permute.xlu0 %1221
  %v1225 = vadd.f32 %v1205, %v1220
  %v1226 = vadd.f32 %v1206, %v1222
  %v1227 = vmax.f32 %v1225, 0.0
  %v1228 = vmax.f32 %v1226, 0.0
  %vm1229 = vcmask 400648
  %1230 = vst.msk [vmem:[%s3 + $0x10] sm:$0xff] %vm1229, %v1227
  %1231 = vst.msk [vmem:[%s3 + $0x28] sm:$0xff] %vm1229, %v1228
  // Predicated region
  $region14: #{conv1x1_pad1_add_relu.1} parent=0 // pred_check
    _
  $region15: #{conv1x1_pad1_add_relu.1} parent=0 // pred_check_branch
    %1233 = sbr.rel (0) target = $region17
  $region16: #{conv1x1_pad1_add_relu.1} parent=0 // pred_region
    _
  $region17: #{conv1x1_pad1_add_relu.1} parent=0 // pred_fallthru
    _
  // Predicated region
  $region18: #{conv1x1_pad1_add_relu.1} parent=0 // pred_check
    _
  $region19: #{conv1x1_pad1_add_relu.1} parent=0 // pred_check_branch
    %1235 = sbr.rel (0) target = $region21
  $region20: #{conv1x1_pad1_add_relu.1} parent=0 // pred_region
    _
  $region21: #{conv1x1_pad1_add_relu.1} parent=0 // pred_fallthru
    _

</llo_original>
